<compile_context>
chip_gen: v5e
topology: v5e:2x2
jax: 0.10.0
libtpu: 0.0.40
codegen_flags: <defaults>
</compile_context>

<pallas_src>
import functools

import jax
import jax.numpy as jnp
from jax import lax
from jax.experimental import pallas as pl
from jax.experimental.pallas import tpu as pltpu


# ----------------------------------------------------------------------------
# GCN hop kernel:  out = act((A @ X) @ W + b)
#   grid = (N // tm, N // tk)
#     axis 0: row tiles of A            -> "parallel"
#     axis 1: reduction over A columns  -> "arbitrary" (last)
#   acc_ref (VMEM, f32) accumulates the A@X partials; the small projection by W,
#   the bias add and the activation run once per row tile at finalize.
# ----------------------------------------------------------------------------
def gcn_hop_kernel(a_ref, x_ref, w_ref, b_ref, out_ref, acc_ref, *, activation):
    k = pl.program_id(1)

    @pl.when(k == 0)
    def _():
        acc_ref[...] = jnp.zeros_like(acc_ref)

    acc_ref[...] += jnp.dot(a_ref[...], x_ref[...],
                            preferred_element_type=jnp.float32)

    @pl.when(k == pl.num_programs(1) - 1)
    def _():
        out = jnp.dot(acc_ref[...], w_ref[...],
                      preferred_element_type=jnp.float32) + b_ref[...]
        if activation == "relu":
            out = jnp.maximum(out, 0.0)
        out_ref[...] = out.astype(out_ref.dtype)


def gcn_hop(a, x, w, b, *, activation=None, out_dtype=jnp.float32,
            tm=128, tk=128):
    N = a.shape[0]
    F = x.shape[1]
    G = w.shape[1]
    tm = min(tm, N)
    tk = min(tk, N)
    assert N % tm == 0 and N % tk == 0, "N must be divisible by the tile sizes"

    return pl.pallas_call(
        functools.partial(gcn_hop_kernel, activation=activation),
        out_shape=jax.ShapeDtypeStruct((N, G), out_dtype),
        grid_spec=pltpu.PrefetchScalarGridSpec(
            num_scalar_prefetch=0,
            grid=(N // tm, N // tk),
            in_specs=[
                pl.BlockSpec((tm, tk), lambda i, k: (i, k)),   # A row/col tile
                pl.BlockSpec((tk, F), lambda i, k: (k, 0)),    # X rows for A cols
                pl.BlockSpec((F, G), lambda i, k: (0, 0)),     # W  (VMEM resident)
                pl.BlockSpec((1, G), lambda i, k: (0, 0)),     # b  (VMEM resident)
            ],
            out_specs=pl.BlockSpec((tm, G), lambda i, k: (i, 0)),
            scratch_shapes=[pltpu.VMEM((tm, F), jnp.float32)],
        ),
        compiler_params=pltpu.CompilerParams(
            dimension_semantics=("parallel", "arbitrary")),
    )(a, x, w, b)


# ----------------------------------------------------------------------------
# Encoder: shared GCN layer + 3 fused linear heads -> (z1, z2, z3)
# ----------------------------------------------------------------------------
def gcn_encode(a, x, params):
    Z = params["w1"].shape[1]

    # Fuse the three heads into one lane-dense [H, 3Z] weight; pad to a multiple
    # of 128 lanes so the hop-2 output stores are unmasked.
    w_heads = jnp.concatenate([params["w1"], params["w2"], params["w3"]], axis=1)
    b_heads = jnp.concatenate([params["b1"], params["b2"], params["b3"]], axis=1)
    g = w_heads.shape[1]
    g_pad = -(-g // 128) * 128
    if g_pad != g:
        w_heads = jnp.pad(w_heads, ((0, 0), (0, g_pad - g)))
        b_heads = jnp.pad(b_heads, ((0, 0), (0, g_pad - g)))

    # bf16 for the big operands (halves HBM/VMEM traffic, 2x MXU throughput);
    # accumulation stays f32 inside the kernels.
    a_bf = a.astype(jnp.bfloat16)
    x_bf = x.astype(jnp.bfloat16)

    # hop 1: h = relu((A @ X) @ W0 + b0)
    h = gcn_hop(a_bf, x_bf, params["w0"], params["b0"],
                activation="relu", out_dtype=jnp.bfloat16)
    # hop 2: [z1 | z2 | z3] = (A @ h) @ [W1|W2|W3] + [b1|b2|b3]
    z_all = gcn_hop(a_bf, h, w_heads, b_heads,
                    activation=None, out_dtype=jnp.float32)
    return z_all[:, :Z], z_all[:, Z:2 * Z], z_all[:, 2 * Z:3 * Z]


# ----------------------------------------------------------------------------
# InnerProductDecoder kernel:  adj[i, j] = sigma(Z_i @ Z_j^T)  (tiled)
# ----------------------------------------------------------------------------
def decoder_kernel(zi_ref, zj_ref, adj_ref, *, sigmoid):
    adj = lax.dot_general(
        zi_ref[...], zj_ref[...],
        dimension_numbers=(((1,), (1,)), ((), ())),   # contract last dims, no z.T
        preferred_element_type=jnp.float32)
    if sigmoid:
        adj = jax.nn.sigmoid(adj)
    adj_ref[...] = adj.astype(adj_ref.dtype)


def inner_product_decode(z, sigmoid=False, *, tm=128, tn=128):
    N, Zd = z.shape
    tm = min(tm, N)
    tn = min(tn, N)
    assert N % tm == 0 and N % tn == 0
    z_bf = z.astype(jnp.bfloat16)

    return pl.pallas_call(
        functools.partial(decoder_kernel, sigmoid=sigmoid),
        out_shape=jax.ShapeDtypeStruct((N, N), jnp.float32),
        grid_spec=pltpu.PrefetchScalarGridSpec(
            num_scalar_prefetch=0,
            grid=(N // tm, N // tn),
            in_specs=[
                pl.BlockSpec((tm, Zd), lambda i, j: (i, 0)),
                pl.BlockSpec((tn, Zd), lambda i, j: (j, 0)),
            ],
            out_specs=pl.BlockSpec((tm, tn), lambda i, j: (i, j)),
        ),
        compiler_params=pltpu.CompilerParams(
            dimension_semantics=("parallel", "parallel")),
    )(z_bf, z_bf)


# ----------------------------------------------------------------------------
# GAE forward: z1, z2, z3 = encoder(x, edge_index); return z1
# ----------------------------------------------------------------------------
def gae_forward(x, edge_index, params, num_nodes):
    a = normalized_adjacency(edge_index, num_nodes)  # glue (plain JAX)
    z1, z2, z3 = gcn_encode(a, x, params)
    return z1


# ----------------------------------------------------------------------------
# Glue: dense, symmetrically-normalized adjacency with self-loops.
# ----------------------------------------------------------------------------
def normalized_adjacency(edge_index, num_nodes):
    src, dst = edge_index[0], edge_index[1]
    a = jnp.zeros((num_nodes, num_nodes), jnp.float32)
    a = a.at[src, dst].set(1.0)
    a = jnp.maximum(a, a.T)                        # symmetrize
    a = a + jnp.eye(num_nodes, dtype=jnp.float32)  # self-loops
    deg = jnp.sum(a, axis=1)
    d_inv_sqrt = 1.0 / jnp.sqrt(deg)
    return a * d_inv_sqrt[:, None] * d_inv_sqrt[None, :]


def init_params(key, f_in, hidden, latent):
    ks = jax.random.split(key, 4)

    def glorot(k, fan_in, fan_out):
        scale = jnp.sqrt(6.0 / (fan_in + fan_out))
        return jax.random.uniform(k, (fan_in, fan_out), jnp.float32, -scale, scale)

    return {
        "w0": glorot(ks[0], f_in, hidden), "b0": jnp.zeros((1, hidden), jnp.float32),
        "w1": glorot(ks[1], hidden, latent), "b1": jnp.zeros((1, latent), jnp.float32),
        "w2": glorot(ks[2], hidden, latent), "b2": jnp.zeros((1, latent), jnp.float32),
        "w3": glorot(ks[3], hidden, latent), "b3": jnp.zeros((1, latent), jnp.float32),
    }


if __name__ == "__main__":
    N, F_IN, HIDDEN, LATENT = 256, 64, 128, 32

    key = jax.random.PRNGKey(0)
    k_x, k_p = jax.random.split(key)

    x = jax.random.normal(k_x, (N, F_IN), jnp.float32)

    # Deterministic ring graph edges (both directions).
    idx = jnp.arange(N, dtype=jnp.int32)
    src = jnp.concatenate([idx, (idx + 1) % N])
    dst = jnp.concatenate([(idx + 1) % N, idx])
    edge_index = jnp.stack([src, dst], axis=0)  # [2, 2N]

    params = init_params(k_p, F_IN, HIDDEN, LATENT)

    # Chain encoder + decoder under one jit so z1 never round-trips to host.
    @jax.jit
    def run(x, edge_index, params):
        z1 = gae_forward(x, edge_index, params, N)          # GAE.forward -> z1
        adj = inner_product_decode(z1, sigmoid=False)        # InnerProductDecoder
        return z1, adj

    z1, adj = run(x, edge_index, params)
    z1, adj = jax.block_until_ready((z1, adj))

    assert z1.shape == (N, LATENT) and adj.shape == (N, N)
    assert bool(jnp.all(jnp.isfinite(z1))) and bool(jnp.all(jnp.isfinite(adj)))
    print("KERNEL_OK")
</pallas_src>

<mosaic_0001>
module attributes {stable_mosaic.version = 11 : i64} {
  func.func @gcn_hop_kernel(%arg0: i32, %arg1: i32, %arg2: memref<128x128xbf16, #tpu.memory_space<vmem>>, %arg3: memref<128x64xbf16, #tpu.memory_space<vmem>>, %arg4: memref<64x128xf32, #tpu.memory_space<vmem>>, %arg5: memref<1x128xf32, #tpu.memory_space<vmem>>, %arg6: memref<128x128xbf16, #tpu.memory_space<vmem>>, %arg7: memref<128x64xf32, #tpu.memory_space<vmem>>) attributes {dimension_semantics = [#tpu.dimension_semantics<parallel>, #tpu.dimension_semantics<arbitrary>], iteration_bounds = array<i64: 2, 2>, scalar_prefetch = 0 : i64, scratch_operands = 1 : i64, tpu.core_type = #tpu.core_type<tc>, window_params = [{transform_indices = @transform_0, window_bounds = array<i64: 128, 128>}, {transform_indices = @transform_1, window_bounds = array<i64: 128, 64>}, {pipeline_mode = #tpu.pipeline_mode<synchronous>, transform_indices = @transform_2, window_bounds = array<i64: 64, 128>}, {pipeline_mode = #tpu.pipeline_mode<synchronous>, transform_indices = @transform_3, window_bounds = array<i64: 1, 128>}, {transform_indices = @transform_4, window_bounds = array<i64: 128, 128>}]} {
    %c0_i32 = arith.constant 0 : i32
    %0 = arith.cmpi eq, %arg1, %c0_i32 : i32
    %1 = arith.extui %0 : i1 to i32
    %c0_i32_0 = arith.constant 0 : i32
    %2 = arith.cmpi ne, %1, %c0_i32_0 : i32
    scf.if %2 {
      %cst_9 = arith.constant 0.000000e+00 : f32
      %12 = vector.broadcast %cst_9 : f32 to vector<128x64xf32>
      %c0_10 = arith.constant 0 : index
      %c0_11 = arith.constant 0 : index
      %13 = vector.load %arg7[%c0_10, %c0_11] : memref<128x64xf32, #tpu.memory_space<vmem>>, vector<128x64xf32>
      tpu.vector_store %arg7[%c0_10, %c0_11], %12 {strides = array<i32>} : memref<128x64xf32, #tpu.memory_space<vmem>>, vector<128x64xf32>,
    } else {
    }
    %c0 = arith.constant 0 : index
    %c0_1 = arith.constant 0 : index
    %3 = vector.load %arg7[%c0, %c0_1] : memref<128x64xf32, #tpu.memory_space<vmem>>, vector<128x64xf32>
    %c0_2 = arith.constant 0 : index
    %c0_3 = arith.constant 0 : index
    %4 = vector.load %arg2[%c0_2, %c0_3] : memref<128x128xbf16, #tpu.memory_space<vmem>>, vector<128x128xbf16>
    %c0_4 = arith.constant 0 : index
    %c0_5 = arith.constant 0 : index
    %5 = vector.load %arg3[%c0_4, %c0_5] : memref<128x64xbf16, #tpu.memory_space<vmem>>, vector<128x64xbf16>
    %cst = arith.constant dense<0.000000e+00> : vector<128x64xf32>
    %6 = tpu.matmul %4, %5, %cst {dimension_numbers = #tpu.dot_dimension_numbers<[1], [0], [0], [1], [0, 0, 1, 1], [], []>} : vector<128x128xbf16>, vector<128x64xbf16>, vector<128x64xf32> -> vector<128x64xf32>
    %7 = arith.addf %3, %6 : vector<128x64xf32>
    %c0_6 = arith.constant 0 : index
    %c0_7 = arith.constant 0 : index
    %8 = vector.load %arg7[%c0_6, %c0_7] : memref<128x64xf32, #tpu.memory_space<vmem>>, vector<128x64xf32>
    tpu.vector_store %arg7[%c0_6, %c0_7], %7 {strides = array<i32>} : memref<128x64xf32, #tpu.memory_space<vmem>>, vector<128x64xf32>,
    %c1_i32 = arith.constant 1 : i32
    %9 = arith.cmpi eq, %arg1, %c1_i32 : i32
    %10 = arith.extui %9 : i1 to i32
    %c0_i32_8 = arith.constant 0 : i32
    %11 = arith.cmpi ne, %10, %c0_i32_8 : i32
    scf.if %11 {
      %c0_9 = arith.constant 0 : index
      %c0_10 = arith.constant 0 : index
      %12 = vector.load %arg7[%c0_9, %c0_10] : memref<128x64xf32, #tpu.memory_space<vmem>>, vector<128x64xf32>
      %c0_11 = arith.constant 0 : index
      %c0_12 = arith.constant 0 : index
      %13 = vector.load %arg4[%c0_11, %c0_12] : memref<64x128xf32, #tpu.memory_space<vmem>>, vector<64x128xf32>
      %cst_13 = arith.constant dense<0.000000e+00> : vector<128x128xf32>
      %14 = tpu.matmul %12, %13, %cst_13 {dimension_numbers = #tpu.dot_dimension_numbers<[1], [0], [0], [1], [0, 0, 1, 1], [], []>} : vector<128x64xf32>, vector<64x128xf32>, vector<128x128xf32> -> vector<128x128xf32>
      %c0_14 = arith.constant 0 : index
      %c0_15 = arith.constant 0 : index
      %15 = vector.load %arg5[%c0_14, %c0_15] : memref<1x128xf32, #tpu.memory_space<vmem>>, vector<1x128xf32>
      %16 = vector.broadcast %15 : vector<1x128xf32> to vector<128x128xf32>
      %17 = arith.addf %14, %16 : vector<128x128xf32>
      %cst_16 = arith.constant 0.000000e+00 : f32
      %18 = vector.broadcast %cst_16 : f32 to vector<128x128xf32>
      %19 = arith.maximumf %17, %18 : vector<128x128xf32>
      %20 = arith.truncf %19 : vector<128x128xf32> to vector<128x128xbf16>
      %c0_17 = arith.constant 0 : index
      %c0_18 = arith.constant 0 : index
      %21 = vector.load %arg6[%c0_17, %c0_18] : memref<128x128xbf16, #tpu.memory_space<vmem>>, vector<128x128xbf16>
      tpu.vector_store %arg6[%c0_17, %c0_18], %20 {strides = array<i32>} : memref<128x128xbf16, #tpu.memory_space<vmem>>, vector<128x128xbf16>,
    } else {
    }
    return
  }
  func.func @transform_0(%arg0: i32, %arg1: i32) -> (i32, i32) {
    %c0_i32 = arith.constant 0 : i32
    return %arg0, %arg1 : i32, i32
  }
  func.func @transform_1(%arg0: i32, %arg1: i32) -> (i32, i32) {
    %c0_i32 = arith.constant 0 : i32
    %c0_i32_0 = arith.constant 0 : i32
    return %arg1, %c0_i32 : i32, i32
  }
  func.func @transform_2(%arg0: i32, %arg1: i32) -> (i32, i32) {
    %c0_i32 = arith.constant 0 : i32
    %c0_i32_0 = arith.constant 0 : i32
    %c0_i32_1 = arith.constant 0 : i32
    return %c0_i32, %c0_i32_0 : i32, i32
  }
  func.func @transform_3(%arg0: i32, %arg1: i32) -> (i32, i32) {
    %c0_i32 = arith.constant 0 : i32
    %c0_i32_0 = arith.constant 0 : i32
    %c0_i32_1 = arith.constant 0 : i32
    return %c0_i32, %c0_i32_0 : i32, i32
  }
  func.func @transform_4(%arg0: i32, %arg1: i32) -> (i32, i32) {
    %c0_i32 = arith.constant 0 : i32
    %c0_i32_0 = arith.constant 0 : i32
    return %arg0, %c0_i32 : i32, i32
  }
}

module attributes {stable_mosaic.version = 11 : i64} {
  func.func @decoder_kernel(%arg0: i32, %arg1: i32, %arg2: memref<128x32xbf16, #tpu.memory_space<vmem>>, %arg3: memref<128x32xbf16, #tpu.memory_space<vmem>>, %arg4: memref<128x128xf32, #tpu.memory_space<vmem>>) attributes {dimension_semantics = [#tpu.dimension_semantics<parallel>, #tpu.dimension_semantics<parallel>], iteration_bounds = array<i64: 2, 2>, scalar_prefetch = 0 : i64, scratch_operands = 0 : i64, tpu.core_type = #tpu.core_type<tc>, window_params = [{transform_indices = @transform_0, window_bounds = array<i64: 128, 32>}, {transform_indices = @transform_1, window_bounds = array<i64: 128, 32>}, {transform_indices = @transform_2, window_bounds = array<i64: 128, 128>}]} {
    %c0 = arith.constant 0 : index
    %c0_0 = arith.constant 0 : index
    %0 = vector.load %arg2[%c0, %c0_0] : memref<128x32xbf16, #tpu.memory_space<vmem>>, vector<128x32xbf16>
    %c0_1 = arith.constant 0 : index
    %c0_2 = arith.constant 0 : index
    %1 = vector.load %arg3[%c0_1, %c0_2] : memref<128x32xbf16, #tpu.memory_space<vmem>>, vector<128x32xbf16>
    %cst = arith.constant dense<0.000000e+00> : vector<128x128xf32>
    %2 = tpu.matmul %0, %1, %cst {dimension_numbers = #tpu.dot_dimension_numbers<[1], [1], [0], [0], [0, 0, 1, 0], [], []>} : vector<128x32xbf16>, vector<128x32xbf16>, vector<128x128xf32> -> vector<128x128xf32>
    %c0_3 = arith.constant 0 : index
    %c0_4 = arith.constant 0 : index
    %3 = vector.load %arg4[%c0_3, %c0_4] : memref<128x128xf32, #tpu.memory_space<vmem>>, vector<128x128xf32>
    tpu.vector_store %arg4[%c0_3, %c0_4], %2 {strides = array<i32>} : memref<128x128xf32, #tpu.memory_space<vmem>>, vector<128x128xf32>,
    return
  }
  func.func @transform_0(%arg0: i32, %arg1: i32) -> (i32, i32) {
    %c0_i32 = arith.constant 0 : i32
    %c0_i32_0 = arith.constant 0 : i32
    return %arg0, %c0_i32 : i32, i32
  }
  func.func @transform_1(%arg0: i32, %arg1: i32) -> (i32, i32) {
    %c0_i32 = arith.constant 0 : i32
    %c0_i32_0 = arith.constant 0 : i32
    return %arg1, %c0_i32 : i32, i32
  }
  func.func @transform_2(%arg0: i32, %arg1: i32) -> (i32, i32) {
    %c0_i32 = arith.constant 0 : i32
    return %arg0, %arg1 : i32, i32
  }
}

module attributes {stable_mosaic.version = 11 : i64} {
  func.func @gcn_hop_kernel(%arg0: i32, %arg1: i32, %arg2: memref<128x128xbf16, #tpu.memory_space<vmem>>, %arg3: memref<128x128xbf16, #tpu.memory_space<vmem>>, %arg4: memref<128x128xf32, #tpu.memory_space<vmem>>, %arg5: memref<1x128xf32, #tpu.memory_space<vmem>>, %arg6: memref<128x128xf32, #tpu.memory_space<vmem>>, %arg7: memref<128x128xf32, #tpu.memory_space<vmem>>) attributes {dimension_semantics = [#tpu.dimension_semantics<parallel>, #tpu.dimension_semantics<arbitrary>], iteration_bounds = array<i64: 2, 2>, scalar_prefetch = 0 : i64, scratch_operands = 1 : i64, tpu.core_type = #tpu.core_type<tc>, window_params = [{transform_indices = @transform_0, window_bounds = array<i64: 128, 128>}, {transform_indices = @transform_1, window_bounds = array<i64: 128, 128>}, {pipeline_mode = #tpu.pipeline_mode<synchronous>, transform_indices = @transform_2, window_bounds = array<i64: 128, 128>}, {pipeline_mode = #tpu.pipeline_mode<synchronous>, transform_indices = @transform_3, window_bounds = array<i64: 1, 128>}, {transform_indices = @transform_4, window_bounds = array<i64: 128, 128>}]} {
    %c0_i32 = arith.constant 0 : i32
    %0 = arith.cmpi eq, %arg1, %c0_i32 : i32
    %1 = arith.extui %0 : i1 to i32
    %c0_i32_0 = arith.constant 0 : i32
    %2 = arith.cmpi ne, %1, %c0_i32_0 : i32
    scf.if %2 {
      %cst_9 = arith.constant 0.000000e+00 : f32
      %12 = vector.broadcast %cst_9 : f32 to vector<128x128xf32>
      %c0_10 = arith.constant 0 : index
      %c0_11 = arith.constant 0 : index
      %13 = vector.load %arg7[%c0_10, %c0_11] : memref<128x128xf32, #tpu.memory_space<vmem>>, vector<128x128xf32>
      tpu.vector_store %arg7[%c0_10, %c0_11], %12 {strides = array<i32>} : memref<128x128xf32, #tpu.memory_space<vmem>>, vector<128x128xf32>,
    } else {
    }
    %c0 = arith.constant 0 : index
    %c0_1 = arith.constant 0 : index
    %3 = vector.load %arg7[%c0, %c0_1] : memref<128x128xf32, #tpu.memory_space<vmem>>, vector<128x128xf32>
    %c0_2 = arith.constant 0 : index
    %c0_3 = arith.constant 0 : index
    %4 = vector.load %arg2[%c0_2, %c0_3] : memref<128x128xbf16, #tpu.memory_space<vmem>>, vector<128x128xbf16>
    %c0_4 = arith.constant 0 : index
    %c0_5 = arith.constant 0 : index
    %5 = vector.load %arg3[%c0_4, %c0_5] : memref<128x128xbf16, #tpu.memory_space<vmem>>, vector<128x128xbf16>
    %cst = arith.constant dense<0.000000e+00> : vector<128x128xf32>
    %6 = tpu.matmul %4, %5, %cst {dimension_numbers = #tpu.dot_dimension_numbers<[1], [0], [0], [1], [0, 0, 1, 1], [], []>} : vector<128x128xbf16>, vector<128x128xbf16>, vector<128x128xf32> -> vector<128x128xf32>
    %7 = arith.addf %3, %6 : vector<128x128xf32>
    %c0_6 = arith.constant 0 : index
    %c0_7 = arith.constant 0 : index
    %8 = vector.load %arg7[%c0_6, %c0_7] : memref<128x128xf32, #tpu.memory_space<vmem>>, vector<128x128xf32>
    tpu.vector_store %arg7[%c0_6, %c0_7], %7 {strides = array<i32>} : memref<128x128xf32, #tpu.memory_space<vmem>>, vector<128x128xf32>,
    %c1_i32 = arith.constant 1 : i32
    %9 = arith.cmpi eq, %arg1, %c1_i32 : i32
    %10 = arith.extui %9 : i1 to i32
    %c0_i32_8 = arith.constant 0 : i32
    %11 = arith.cmpi ne, %10, %c0_i32_8 : i32
    scf.if %11 {
      %c0_9 = arith.constant 0 : index
      %c0_10 = arith.constant 0 : index
      %12 = vector.load %arg7[%c0_9, %c0_10] : memref<128x128xf32, #tpu.memory_space<vmem>>, vector<128x128xf32>
      %c0_11 = arith.constant 0 : index
      %c0_12 = arith.constant 0 : index
      %13 = vector.load %arg4[%c0_11, %c0_12] : memref<128x128xf32, #tpu.memory_space<vmem>>, vector<128x128xf32>
      %cst_13 = arith.constant dense<0.000000e+00> : vector<128x128xf32>
      %14 = tpu.matmul %12, %13, %cst_13 {dimension_numbers = #tpu.dot_dimension_numbers<[1], [0], [0], [1], [0, 0, 1, 1], [], []>} : vector<128x128xf32>, vector<128x128xf32>, vector<128x128xf32> -> vector<128x128xf32>
      %c0_14 = arith.constant 0 : index
      %c0_15 = arith.constant 0 : index
      %15 = vector.load %arg5[%c0_14, %c0_15] : memref<1x128xf32, #tpu.memory_space<vmem>>, vector<1x128xf32>
      %16 = vector.broadcast %15 : vector<1x128xf32> to vector<128x128xf32>
      %17 = arith.addf %14, %16 : vector<128x128xf32>
      %c0_16 = arith.constant 0 : index
      %c0_17 = arith.constant 0 : index
      %18 = vector.load %arg6[%c0_16, %c0_17] : memref<128x128xf32, #tpu.memory_space<vmem>>, vector<128x128xf32>
      tpu.vector_store %arg6[%c0_16, %c0_17], %17 {strides = array<i32>} : memref<128x128xf32, #tpu.memory_space<vmem>>, vector<128x128xf32>,
    } else {
    }
    return
  }
  func.func @transform_0(%arg0: i32, %arg1: i32) -> (i32, i32) {
    %c0_i32 = arith.constant 0 : i32
    return %arg0, %arg1 : i32, i32
  }
  func.func @transform_1(%arg0: i32, %arg1: i32) -> (i32, i32) {
    %c0_i32 = arith.constant 0 : i32
    %c0_i32_0 = arith.constant 0 : i32
    return %arg1, %c0_i32 : i32, i32
  }
  func.func @transform_2(%arg0: i32, %arg1: i32) -> (i32, i32) {
    %c0_i32 = arith.constant 0 : i32
    %c0_i32_0 = arith.constant 0 : i32
    %c0_i32_1 = arith.constant 0 : i32
    return %c0_i32, %c0_i32_0 : i32, i32
  }
  func.func @transform_3(%arg0: i32, %arg1: i32) -> (i32, i32) {
    %c0_i32 = arith.constant 0 : i32
    %c0_i32_0 = arith.constant 0 : i32
    %c0_i32_1 = arith.constant 0 : i32
    return %c0_i32, %c0_i32_0 : i32, i32
  }
  func.func @transform_4(%arg0: i32, %arg1: i32) -> (i32, i32) {
    %c0_i32 = arith.constant 0 : i32
    %c0_i32_0 = arith.constant 0 : i32
    return %arg0, %c0_i32 : i32, i32
  }
}

</mosaic_0001>

<llo_original>
// kernel: run.5
$region0: #{run.5}
  #allocation0 [shape = 'u32[]', space=smem, size = 0x4, offset = 0x4, fixed_abs, tag = 'smem constant byte address 0x4 - core index']
  #allocation1 [shape = 'u32[72,128]{1,0:T(1,128)}', space=vmem, size = 0x9000, scoped, tag = 'internal scratch']
  %s0 = inlined_call_operand.vmem [shape: bf16[256,32], index: 0, kind: input, shape index: {}, may-alias: {0,1}]
  %s1 = inlined_call_operand.vmem [shape: bf16[256,32], index: 1, kind: input, shape index: {}, may-alias: {0,1}]
  %s2 = inlined_call_operand.hbm [shape: f32[256,256], index: 2, kind: output, shape index: {}]
  %s3 = sld [smem:[#allocation0]]
  $region41: #{run.5} parent=0
    _
  %s5 = ssub.s32 1, %s3
  %s6 = scalar_select 0, %s5, %s3
  $region1: #{run.5} parent=0
    #allocation2 [shape = 'u8[131072]{0}', space=vmem, size = 0x20000, scoped, tag = 'output window, operand 0']
    #allocation3 [shape = 's32[2]{0}', space=sflag, size = 0x8, scoped, tag = 'scoped memory for run.5']
    %7 = vsyncpa [#allocation3], 0
    %s8 = scalar_lea.sflag [#allocation3], 1
    %9 = vsyncpa %s8, 0
    loop: start=0, step=1, limit=6
    $region2: #{run.5} parent=1 // loop_pre_header
      _
    $region3: #{run.5} parent=1 // loop_header
      %s11 = sphi 0, %s15
      %p12 = scmp.ge.s32.totalorder %s11, 6
      %s18 = sphi 0, %s30
      %s19 = sphi 0, %s26
      %s20 = sphi 0, %s18
      %s21 = sphi 0, %s19
      %s22 = sphi 0, %s20
      %s23 = sphi 0, %s21
      %s33 = sphi 0, %s35
      %s36 = sphi 0, %s33
      %s37 = sphi 0, %s36
      %s53 = sphi 0, %s37
      %s59 = sphi 0, %s61
      %s62 = sphi 0, %s59
      %s63 = sphi 0, %s62
      %s79 = sphi 0, %s63
      %s87 = sphi 0, %s89
      %s90 = sphi 0, %s87
      %s91 = sphi 0, %s90
      %s107 = sphi 0, %s91
    $region4: #{run.5} parent=1 // loop_header_branch
      %14 = sbr.rel (%p12) target = $region8
    $region5: #{run.5} parent=1 // loop_body
      %s16 = ssub.s32 %s11, 1
      %s17 = ssub.s32 %s11, 2
      %s24 = sadd.s32 1, %s19
      %p25 = scmp.ge.s32.totalorder %s24, 2
      %s26 = scalar_select %p25, 0, %s24
      %s27 = sadd.s32 1, %s18
      %s28 = scalar_select %p25, %s27, %s18
      %p29 = scmp.ge.s32.totalorder %s28, 2
      %s30 = scalar_select %p29, 0, %s28
      %s31 = ssub.s32 %s18, %s30
      %p32 = scmp.eq.s32.totalorder %s31, 0
      %s34 = sadd.s32 %s33, 1
      %s35 = scalar_select %p32, %s33, %s34
      %p38 = pneg %p32
      %p39 = scmp.eq.s32.totalorder %s11, 3
      %p40 = por %p38, %p39
      %p41 = scmp.ne.s32.totalorder %s33, %s36
      %p42 = scmp.eq.s32.totalorder %s11, 0
      %p43 = por %p41, %p42
      %p44 = scmp.ne.s32.totalorder %s33, %s36
      %p45 = scmp.eq.s32.totalorder %s16, 3
      %p46 = por %p44, %p45
      %p47 = scmp.ne.s32.totalorder %s36, %s37
      %p48 = scmp.eq.s32.totalorder %s16, 0
      %p49 = por %p47, %p48
      %p50 = scmp.ne.s32.totalorder %s36, %s37
      %p51 = scmp.eq.s32.totalorder %s17, 3
      %p52 = por %p50, %p51
      %p54 = scmp.ne.s32.totalorder %s37, %s53
      %p55 = scmp.eq.s32.totalorder %s17, 0
      %p56 = por %p54, %p55
      %s57 = ssub.s32 %s19, %s26
      %p58 = scmp.eq.s32.totalorder %s57, 0
      %s60 = sadd.s32 %s59, 1
      %s61 = scalar_select %p58, %s59, %s60
      %p64 = pneg %p58
      %p65 = scmp.eq.s32.totalorder %s11, 3
      %p66 = por %p64, %p65
      %p67 = scmp.ne.s32.totalorder %s59, %s62
      %p68 = scmp.eq.s32.totalorder %s11, 0
      %p69 = por %p67, %p68
      %p70 = scmp.ne.s32.totalorder %s59, %s62
      %p71 = scmp.eq.s32.totalorder %s16, 3
      %p72 = por %p70, %p71
      %p73 = scmp.ne.s32.totalorder %s62, %s63
      %p74 = scmp.eq.s32.totalorder %s16, 0
      %p75 = por %p73, %p74
      %p76 = scmp.ne.s32.totalorder %s62, %s63
      %p77 = scmp.eq.s32.totalorder %s17, 3
      %p78 = por %p76, %p77
      %p80 = scmp.ne.s32.totalorder %s63, %s79
      %p81 = scmp.eq.s32.totalorder %s17, 0
      %p82 = por %p80, %p81
      %s83 = ssub.s32 %s18, %s30
      %s84 = ssub.s32 %s19, %s26
      %s85 = sor.u32 %s83, %s84
      %p86 = scmp.eq.s32.totalorder %s85, 0
      %s88 = sadd.s32 %s87, 1
      %s89 = scalar_select %p86, %s87, %s88
      %p92 = pneg %p86
      %p93 = scmp.eq.s32.totalorder %s11, 3
      %p94 = por %p92, %p93
      %p95 = scmp.ne.s32.totalorder %s87, %s90
      %p96 = scmp.eq.s32.totalorder %s11, 0
      %p97 = por %p95, %p96
      %p98 = scmp.ne.s32.totalorder %s87, %s90
      %p99 = scmp.eq.s32.totalorder %s16, 3
      %p100 = por %p98, %p99
      %p101 = scmp.ne.s32.totalorder %s90, %s91
      %p102 = scmp.eq.s32.totalorder %s16, 0
      %p103 = por %p101, %p102
      %p104 = scmp.ne.s32.totalorder %s90, %s91
      %p105 = scmp.eq.s32.totalorder %s17, 3
      %p106 = por %p104, %p105
      %p108 = scmp.ne.s32.totalorder %s91, %s107
      %p109 = scmp.eq.s32.totalorder %s17, 0
      %p110 = por %p108, %p109
      %p111 = scmp.le.s32.totalorder 1, %s11
      %p112 = scmp.lt.s32.totalorder %s11, 5
      %p113 = pnand %p111, %p112
      %p114 = pneg %p113
      // Predicated region
      $region9: #{run.5} parent=5 // pred_check
        _
      $region10: #{run.5} parent=5 // pred_check_branch
        %116 = sbr.rel (%p113) target = $region12
      $region11: #{run.5} parent=5 // pred_region
        %s117 = ssub.s32 %s11, 1
      $region12: #{run.5} parent=5 // pred_fallthru
        _
      %p118 = scmp.lt.s32.totalorder %s11, 4
      // Predicated region
      $region13: #{run.5} parent=5 // pred_check
        %p119 = pneg %p118
      $region14: #{run.5} parent=5 // pred_check_branch
        %121 = sbr.rel (%p119) target = $region16
      $region15: #{run.5} parent=5 // pred_region
        // Predicated region
        $region17: #{run.5} parent=15 // pred_check
          %p122 = pneg %p43
        $region18: #{run.5} parent=15 // pred_check_branch
          %124 = sbr.rel (%p122) target = $region20
        $region19: #{run.5} parent=15 // pred_region
          %s125 = smul.u32 16, %s18
          %p126 = scmp.lt.s32.totalorder %s125, 31
          %s127 = scalar_select %p126, %s125, 31
          %s128 = smul.addr %s127, 4
          %s129 = scalar_lea.vmem %s0, %s128
          %s130 = smul.u32 16, %s18
        $region20: #{run.5} parent=15 // pred_fallthru
          _
        // Predicated region
        $region21: #{run.5} parent=15 // pred_check
          %p131 = pneg %p69
        $region22: #{run.5} parent=15 // pred_check_branch
          %133 = sbr.rel (%p131) target = $region24
        $region23: #{run.5} parent=15 // pred_region
          %s134 = smul.u32 16, %s19
          %p135 = scmp.lt.s32.totalorder %s134, 31
          %s136 = scalar_select %p135, %s134, 31
          %s137 = smul.addr %s136, 4
          %s138 = scalar_lea.vmem %s1, %s137
          %s139 = smul.u32 16, %s19
        $region24: #{run.5} parent=15 // pred_fallthru
          _
      $region16: #{run.5} parent=5 // pred_fallthru
        _
      %p140 = scmp.le.s32.totalorder 1, %s11
      %p141 = scmp.lt.s32.totalorder %s11, 5
      %p142 = pnand %p140, %p141
      %p143 = pneg %p142
      // Predicated region
      $region25: #{run.5} parent=5 // pred_check
        _
      $region26: #{run.5} parent=5 // pred_check_branch
        %145 = sbr.rel (%p142) target = $region28
      $region27: #{run.5} parent=5 // pred_region
        %s146 = ssub.s32 %s11, 1
        %s147 = smul.u32 16, %s20
        %p148 = scmp.lt.s32.totalorder %s147, 31
        %s149 = scalar_select %p148, %s147, 31
        %s150 = smul.addr %s149, 4
        %s151 = scalar_lea.vmem %s0, %s150
        %p152 = pneg %p49
        %p153 = pneg %p46
        %s154 = smul.u32 16, %s21
        %p155 = scmp.lt.s32.totalorder %s154, 31
        %s156 = scalar_select %p155, %s154, 31
        %s157 = smul.addr %s156, 4
        %s158 = scalar_lea.vmem %s1, %s157
        %p159 = pneg %p75
        %p160 = pneg %p72
        %p161 = pneg %p103
        %p162 = pneg %p100
        %s163 = sand.u32 %s90, 1
        %s164 = scalar_lea.sflag [#allocation3], %s163
        %s165 = sand.u32 %s90, 1
        %s166 = smul.addr %s165, 128
        %s167 = scalar_lea.vmem [#allocation2], %s166
        %s168 = smul.u32 16, %s20
        %p169 = scmp.lt.s32.totalorder %s168, 31
        %s170 = scalar_select %p169, %s168, 31
        %s171 = smul.addr %s170, 4
        %s172 = scalar_lea.vmem %s0, %s171
        %s173 = smul.u32 16, %s20
        %s174 = smul.u32 16, %s21
        %p175 = scmp.lt.s32.totalorder %s174, 31
        %s176 = scalar_select %p175, %s174, 31
        %s177 = smul.addr %s176, 4
        %s178 = scalar_lea.vmem %s1, %s177
        %s179 = smul.u32 16, %s21
        %s180 = smul.u32 16, %s20
        %v181 = vld [vmem:[%s172] sm:$0xf]
        %v182 = vld [vmem:[%s172 + $0x4] sm:$0xf]
        %v183 = vld [vmem:[%s172 + $0x8] sm:$0xf]
        %v184 = vld [vmem:[%s172 + $0xc] sm:$0xf]
        %v185 = vld [vmem:[%s172 + $0x10] sm:$0xf]
        %v186 = vld [vmem:[%s172 + $0x14] sm:$0xf]
        %v187 = vld [vmem:[%s172 + $0x18] sm:$0xf]
        %v188 = vld [vmem:[%s172 + $0x1c] sm:$0xf]
        %v189 = vld [vmem:[%s172 + $0x20] sm:$0xf]
        %v190 = vld [vmem:[%s172 + $0x24] sm:$0xf]
        %v191 = vld [vmem:[%s172 + $0x28] sm:$0xf]
        %v192 = vld [vmem:[%s172 + $0x2c] sm:$0xf]
        %v193 = vld [vmem:[%s172 + $0x30] sm:$0xf]
        %v194 = vld [vmem:[%s172 + $0x34] sm:$0xf]
        %v195 = vld [vmem:[%s172 + $0x38] sm:$0xf]
        %v196 = vld [vmem:[%s172 + $0x3c] sm:$0xf]
        %v197 = vld [vmem:[%s178] sm:$0xf]
        %v198 = vld [vmem:[%s178 + $0x4] sm:$0xf]
        %v199 = vld [vmem:[%s178 + $0x8] sm:$0xf]
        %v200 = vld [vmem:[%s178 + $0xc] sm:$0xf]
        %v201 = vld [vmem:[%s178 + $0x10] sm:$0xf]
        %v202 = vld [vmem:[%s178 + $0x14] sm:$0xf]
        %v203 = vld [vmem:[%s178 + $0x18] sm:$0xf]
        %v204 = vld [vmem:[%s178 + $0x1c] sm:$0xf]
        %v205 = vld [vmem:[%s178 + $0x20] sm:$0xf]
        %v206 = vld [vmem:[%s178 + $0x24] sm:$0xf]
        %v207 = vld [vmem:[%s178 + $0x28] sm:$0xf]
        %v208 = vld [vmem:[%s178 + $0x2c] sm:$0xf]
        %v209 = vld [vmem:[%s178 + $0x30] sm:$0xf]
        %v210 = vld [vmem:[%s178 + $0x34] sm:$0xf]
        %v211 = vld [vmem:[%s178 + $0x38] sm:$0xf]
        %v212 = vld [vmem:[%s178 + $0x3c] sm:$0xf]
        %v229 = vunpack.c.l.b16 %v181
        %v230 = vunpack.c.l.b16 %v182
        %v231 = vunpack.c.l.b16 %v183
        %v232 = vunpack.c.l.b16 %v184
        %v233 = vunpack.c.l.b16 %v185
        %v234 = vunpack.c.l.b16 %v186
        %v235 = vunpack.c.l.b16 %v187
        %v236 = vunpack.c.l.b16 %v188
        %v237 = vunpack.c.l.b16 %v189
        %v238 = vunpack.c.l.b16 %v190
        %v239 = vunpack.c.l.b16 %v191
        %v240 = vunpack.c.l.b16 %v192
        %v241 = vunpack.c.l.b16 %v193
        %v242 = vunpack.c.l.b16 %v194
        %v243 = vunpack.c.l.b16 %v195
        %v244 = vunpack.c.l.b16 %v196
        %v245 = vpack.c.b16 %v230, %v229
        %v246 = vpack.c.b16 %v232, %v231
        %v247 = vpack.c.b16 %v234, %v233
        %v248 = vpack.c.b16 %v236, %v235
        %v249 = vpack.c.b16 %v238, %v237
        %v250 = vpack.c.b16 %v240, %v239
        %v251 = vpack.c.b16 %v242, %v241
        %v252 = vpack.c.b16 %v244, %v243
        %v269 = vunpack.c.l.b16 %v197
        %v270 = vunpack.c.l.b16 %v198
        %v271 = vunpack.c.l.b16 %v199
        %v272 = vunpack.c.l.b16 %v200
        %v273 = vunpack.c.l.b16 %v201
        %v274 = vunpack.c.l.b16 %v202
        %v275 = vunpack.c.l.b16 %v203
        %v276 = vunpack.c.l.b16 %v204
        %v277 = vunpack.c.l.b16 %v205
        %v278 = vunpack.c.l.b16 %v206
        %v279 = vunpack.c.l.b16 %v207
        %v280 = vunpack.c.l.b16 %v208
        %v281 = vunpack.c.l.b16 %v209
        %v282 = vunpack.c.l.b16 %v210
        %v283 = vunpack.c.l.b16 %v211
        %v284 = vunpack.c.l.b16 %v212
        %v285 = vpack.c.b16 %v270, %v269
        %v286 = vpack.c.b16 %v272, %v271
        %v287 = vpack.c.b16 %v274, %v273
        %v288 = vpack.c.b16 %v276, %v275
        %v289 = vpack.c.b16 %v278, %v277
        %v290 = vpack.c.b16 %v280, %v279
        %v291 = vpack.c.b16 %v282, %v281
        %v292 = vpack.c.b16 %v284, %v283
        %vm293 = vcmask 261120
        %v295 = vsel %vm293, %v245, 0
        %v298 = vsel %vm293, %v246, 0
        %v301 = vsel %vm293, %v247, 0
        %v304 = vsel %vm293, %v248, 0
        %v307 = vsel %vm293, %v249, 0
        %v310 = vsel %vm293, %v250, 0
        %v313 = vsel %vm293, %v251, 0
        %v316 = vsel %vm293, %v252, 0
        %v319 = vsel %vm293, %v285, 0
        %v322 = vsel %vm293, %v286, 0
        %v325 = vsel %vm293, %v287, 0
        %v328 = vsel %vm293, %v288, 0
        %v331 = vsel %vm293, %v289, 0
        %v334 = vsel %vm293, %v290, 0
        %v337 = vsel %vm293, %v291, 0
        %v340 = vsel %vm293, %v292, 0
        %342 = vmatpush.bf16.xpose.msra.mxu0 %v340
        %343 = vmatpush.bf16.xpose.msra.mxu0 %v337
        %344 = vmatpush.bf16.xpose.msra.mxu0 %v334
        %345 = vmatpush.bf16.xpose.msra.mxu0 %v331
        %346 = vmatpush.bf16.xpose.msra.mxu0 %v328
        %347 = vmatpush.bf16.xpose.msra.mxu0 %v325
        %348 = vmatpush.bf16.xpose.msra.mxu0 %v322
        %349 = vmatpush.bf16.xpose.msra.mxu0 %v319
        %350 = vmatmul.bf16.gmra.mxu0 %v295
        %v351 = vpop.f32.mrf.mxu0
        %v352 = vadd.f32 0.0, %v351
        %v353 = vpop.f32.mrf.mxu0
        %v354 = vadd.f32 0.0, %v353
        %355 = vmatmul.bf16.gmra.mxu0 %v298
        %v356 = vpop.f32.mrf.mxu0
        %v357 = vadd.f32 0.0, %v356
        %v358 = vpop.f32.mrf.mxu0
        %v359 = vadd.f32 0.0, %v358
        %360 = vmatmul.bf16.gmra.mxu0 %v301
        %v361 = vpop.f32.mrf.mxu0
        %v362 = vadd.f32 0.0, %v361
        %v363 = vpop.f32.mrf.mxu0
        %v364 = vadd.f32 0.0, %v363
        %365 = vmatmul.bf16.gmra.mxu0 %v304
        %v366 = vpop.f32.mrf.mxu0
        %v367 = vadd.f32 0.0, %v366
        %v368 = vpop.f32.mrf.mxu0
        %v369 = vadd.f32 0.0, %v368
        %370 = vmatmul.bf16.gmra.mxu0 %v307
        %v371 = vpop.f32.mrf.mxu0
        %v372 = vadd.f32 0.0, %v371
        %v373 = vpop.f32.mrf.mxu0
        %v374 = vadd.f32 0.0, %v373
        %375 = vmatmul.bf16.gmra.mxu0 %v310
        %v376 = vpop.f32.mrf.mxu0
        %v377 = vadd.f32 0.0, %v376
        %v378 = vpop.f32.mrf.mxu0
        %v379 = vadd.f32 0.0, %v378
        %380 = vmatmul.bf16.gmra.mxu0 %v313
        %v381 = vpop.f32.mrf.mxu0
        %v382 = vadd.f32 0.0, %v381
        %v383 = vpop.f32.mrf.mxu0
        %v384 = vadd.f32 0.0, %v383
        %385 = vmatmul.bf16.gmra.mxu0 %v316
        %v386 = vpop.f32.mrf.mxu0
        %v387 = vadd.f32 0.0, %v386
        %v388 = vpop.f32.mrf.mxu0
        %v389 = vadd.f32 0.0, %v388
        %390 = vdwg.mxu0
        %391 = vst [vmem:[%s167] sm:$0xff] %v352
        %392 = vst [vmem:[%s167 + $0x8] sm:$0xff] %v354
        %393 = vst [vmem:[%s167 + $0x10] sm:$0xff] %v357
        %394 = vst [vmem:[%s167 + $0x18] sm:$0xff] %v359
        %395 = vst [vmem:[%s167 + $0x20] sm:$0xff] %v362
        %396 = vst [vmem:[%s167 + $0x28] sm:$0xff] %v364
        %397 = vst [vmem:[%s167 + $0x30] sm:$0xff] %v367
        %398 = vst [vmem:[%s167 + $0x38] sm:$0xff] %v369
        %399 = vst [vmem:[%s167 + $0x40] sm:$0xff] %v372
        %400 = vst [vmem:[%s167 + $0x48] sm:$0xff] %v374
        %401 = vst [vmem:[%s167 + $0x50] sm:$0xff] %v377
        %402 = vst [vmem:[%s167 + $0x58] sm:$0xff] %v379
        %403 = vst [vmem:[%s167 + $0x60] sm:$0xff] %v382
        %404 = vst [vmem:[%s167 + $0x68] sm:$0xff] %v384
        %405 = vst [vmem:[%s167 + $0x70] sm:$0xff] %v387
        %406 = vst [vmem:[%s167 + $0x78] sm:$0xff] %v389
        %s407 = sand.u32 %s90, 1
        %s408 = scalar_lea.sflag [#allocation3], %s407
        %s409 = sand.u32 %s90, 1
        %s410 = smul.addr %s409, 128
        %s411 = scalar_lea.vmem [#allocation2], %s410
        // Predicated region
        $region29: #{run.5} parent=27 // pred_check
          %p412 = pneg %p100
        $region30: #{run.5} parent=27 // pred_check_branch
          %414 = sbr.rel (%p412) target = $region32
        $region31: #{run.5} parent=27 // pred_region
          %s415 = smul.u32 16, %s20
          %417 = vsyncadd %s408, 0
          %s418 = smul.addr %s415, 2
          %s419 = sadd.s32 %s21, %s418
          %s420 = smul.addr %s419, 8
          %s421 = scalar_lea.hbm %s2, %s420
          %s422 = sshll.u32 %s411, 4
          %s423 = int_to_ptr.vmem [resolvable:$true] %s422
          %s424 = sshll.u32 %s421, 4
          %s425 = int_to_ptr.hbm [resolvable:$true] %s424
          %430 = dma.vmem_to_hbm [thread:$0]  %s423, 2048, %s425, %s408, 128, 256, 8
        $region32: #{run.5} parent=27 // pred_fallthru
          _
      $region28: #{run.5} parent=5 // pred_fallthru
        _
      %p431 = scmp.le.s32.totalorder 2, %s11
      // Predicated region
      $region33: #{run.5} parent=5 // pred_check
        %p432 = pneg %p431
      $region34: #{run.5} parent=5 // pred_check_branch
        %434 = sbr.rel (%p432) target = $region36
      $region35: #{run.5} parent=5 // pred_region
        %s435 = ssub.s32 %s11, 2
        // Predicated region
        $region37: #{run.5} parent=35 // pred_check
          %p436 = pneg %p106
        $region38: #{run.5} parent=35 // pred_check_branch
          %438 = sbr.rel (%p436) target = $region40
        $region39: #{run.5} parent=35 // pred_region
          %s439 = sand.u32 %s91, 1
          %s440 = scalar_lea.sflag [#allocation3], %s439
          %s441 = sand.u32 %s91, 1
          %s442 = smul.addr %s441, 128
          %s443 = scalar_lea.vmem [#allocation2], %s442
          %445 = dma.done %s440, 2048
        $region40: #{run.5} parent=35 // pred_fallthru
          _
      $region36: #{run.5} parent=5 // pred_fallthru
        _
    $region6: #{run.5} parent=1 // loop_footer
      %s15 = sadd.s32 1, %s11
    $region7: #{run.5} parent=1 // loop_footer_branch
      %10 = sbr.rel target = $region3
    $region8: #{run.5} parent=1 // loop_exit
      _
    %446 = vsyncpa [#allocation3], 1
    %s447 = scalar_lea.sflag [#allocation3], 1
    %448 = vsyncpa %s447, 1

// kernel: run.4
$region0: #{run.4}
  #allocation0 [shape = 'u32[]', space=smem, size = 0x4, offset = 0x4, fixed_abs, tag = 'smem constant byte address 0x4 - core index']
  #allocation1 [shape = 'u32[72,128]{1,0:T(1,128)}', space=vmem, size = 0x9000, scoped, tag = 'internal scratch']
  #allocation2 [shape = 'f32[128,128]{1,0:T(8,128)}', space=vmem, size = 0x10000, scoped, tag = 'scratch operand']
  %s0 = inlined_call_operand.vmem [shape: bf16[256,256], index: 0, kind: input, shape index: {}]
  %s1 = inlined_call_operand.vmem [shape: bf16[256,128], index: 1, kind: input, shape index: {}]
  %s2 = inlined_call_operand.vmem [shape: f32[128,128], index: 2, kind: input, shape index: {}]
  %s3 = inlined_call_operand.vmem [shape: f32[1,128], index: 3, kind: input, shape index: {}]
  %s4 = inlined_call_operand.vmem [shape: f32[256,128], index: 4, kind: output, shape index: {}]
  %s5 = sld [smem:[#allocation0]]
  $region98: #{run.4} parent=0
    _
  %s7 = ssub.s32 1, %s5
  %s8 = scalar_select 0, %s7, %s5
  $region1: #{run.4} parent=0
    #allocation3 [shape = 'u8[65536]{0}', space=vmem, size = 0x10000, scoped, tag = 'input window, operand 0']
    loop: start=0, step=1, limit=6
    $region2: #{run.4} parent=1 // loop_pre_header
      _
    $region3: #{run.4} parent=1 // loop_header
      %s10 = sphi 0, %s14
      %p11 = scmp.ge.s32.totalorder %s10, 6
      %s17 = sphi 0, %s29
      %s18 = sphi 0, %s25
      %s19 = sphi 0, %s17
      %s20 = sphi 0, %s18
      %s21 = sphi 0, %s19
      %s22 = sphi 0, %s20
      %s34 = sphi 0, %s36
      %s37 = sphi 0, %s34
      %s38 = sphi 0, %s37
      %s54 = sphi 0, %s38
      %s60 = sphi 0, %s62
      %s63 = sphi 0, %s60
      %s64 = sphi 0, %s63
      %s80 = sphi 0, %s64
      %s84 = sphi 0, %s84
      %s86 = sphi 0, %s84
      %s87 = sphi 0, %s86
      %s101 = sphi 0, %s87
      %s105 = sphi 0, %s105
      %s107 = sphi 0, %s105
      %s108 = sphi 0, %s107
      %s122 = sphi 0, %s108
      %s128 = sphi 0, %s130
      %s131 = sphi 0, %s128
      %s132 = sphi 0, %s131
      %s148 = sphi 0, %s132
    $region4: #{run.4} parent=1 // loop_header_branch
      %13 = sbr.rel (%p11) target = $region8
    $region5: #{run.4} parent=1 // loop_body
      %s15 = ssub.s32 %s10, 1
      %s16 = ssub.s32 %s10, 2
      %s23 = sadd.s32 1, %s18
      %p24 = scmp.ge.s32.totalorder %s23, 2
      %s25 = scalar_select %p24, 0, %s23
      %s26 = sadd.s32 1, %s17
      %s27 = scalar_select %p24, %s26, %s17
      %p28 = scmp.ge.s32.totalorder %s27, 2
      %s29 = scalar_select %p28, 0, %s27
      %s30 = ssub.s32 %s17, %s29
      %s31 = ssub.s32 %s18, %s25
      %s32 = sor.u32 %s30, %s31
      %p33 = scmp.eq.s32.totalorder %s32, 0
      %s35 = sadd.s32 %s34, 1
      %s36 = scalar_select %p33, %s34, %s35
      %p39 = pneg %p33
      %p40 = scmp.eq.s32.totalorder %s10, 3
      %p41 = por %p39, %p40
      %p42 = scmp.ne.s32.totalorder %s34, %s37
      %p43 = scmp.eq.s32.totalorder %s10, 0
      %p44 = por %p42, %p43
      %p45 = scmp.ne.s32.totalorder %s34, %s37
      %p46 = scmp.eq.s32.totalorder %s15, 3
      %p47 = por %p45, %p46
      %p48 = scmp.ne.s32.totalorder %s37, %s38
      %p49 = scmp.eq.s32.totalorder %s15, 0
      %p50 = por %p48, %p49
      %p51 = scmp.ne.s32.totalorder %s37, %s38
      %p52 = scmp.eq.s32.totalorder %s16, 3
      %p53 = por %p51, %p52
      %p55 = scmp.ne.s32.totalorder %s38, %s54
      %p56 = scmp.eq.s32.totalorder %s16, 0
      %p57 = por %p55, %p56
      %s58 = ssub.s32 %s18, %s25
      %p59 = scmp.eq.s32.totalorder %s58, 0
      %s61 = sadd.s32 %s60, 1
      %s62 = scalar_select %p59, %s60, %s61
      %p65 = pneg %p59
      %p66 = scmp.eq.s32.totalorder %s10, 3
      %p67 = por %p65, %p66
      %p68 = scmp.ne.s32.totalorder %s60, %s63
      %p69 = scmp.eq.s32.totalorder %s10, 0
      %p70 = por %p68, %p69
      %p71 = scmp.ne.s32.totalorder %s60, %s63
      %p72 = scmp.eq.s32.totalorder %s15, 3
      %p73 = por %p71, %p72
      %p74 = scmp.ne.s32.totalorder %s63, %s64
      %p75 = scmp.eq.s32.totalorder %s15, 0
      %p76 = por %p74, %p75
      %p77 = scmp.ne.s32.totalorder %s63, %s64
      %p78 = scmp.eq.s32.totalorder %s16, 3
      %p79 = por %p77, %p78
      %p81 = scmp.ne.s32.totalorder %s64, %s80
      %p82 = scmp.eq.s32.totalorder %s16, 0
      %p83 = por %p81, %p82
      %s85 = sadd.s32 %s84, 1
      %p88 = scmp.eq.s32.totalorder %s10, 3
      %p89 = scmp.ne.s32.totalorder %s84, %s86
      %p90 = scmp.eq.s32.totalorder %s10, 0
      %p91 = por %p89, %p90
      %p92 = scmp.ne.s32.totalorder %s84, %s86
      %p93 = scmp.eq.s32.totalorder %s15, 3
      %p94 = por %p92, %p93
      %p95 = scmp.ne.s32.totalorder %s86, %s87
      %p96 = scmp.eq.s32.totalorder %s15, 0
      %p97 = por %p95, %p96
      %p98 = scmp.ne.s32.totalorder %s86, %s87
      %p99 = scmp.eq.s32.totalorder %s16, 3
      %p100 = por %p98, %p99
      %p102 = scmp.ne.s32.totalorder %s87, %s101
      %p103 = scmp.eq.s32.totalorder %s16, 0
      %p104 = por %p102, %p103
      %s106 = sadd.s32 %s105, 1
      %p109 = scmp.eq.s32.totalorder %s10, 3
      %p110 = scmp.ne.s32.totalorder %s105, %s107
      %p111 = scmp.eq.s32.totalorder %s10, 0
      %p112 = por %p110, %p111
      %p113 = scmp.ne.s32.totalorder %s105, %s107
      %p114 = scmp.eq.s32.totalorder %s15, 3
      %p115 = por %p113, %p114
      %p116 = scmp.ne.s32.totalorder %s107, %s108
      %p117 = scmp.eq.s32.totalorder %s15, 0
      %p118 = por %p116, %p117
      %p119 = scmp.ne.s32.totalorder %s107, %s108
      %p120 = scmp.eq.s32.totalorder %s16, 3
      %p121 = por %p119, %p120
      %p123 = scmp.ne.s32.totalorder %s108, %s122
      %p124 = scmp.eq.s32.totalorder %s16, 0
      %p125 = por %p123, %p124
      %s126 = ssub.s32 %s17, %s29
      %p127 = scmp.eq.s32.totalorder %s126, 0
      %s129 = sadd.s32 %s128, 1
      %s130 = scalar_select %p127, %s128, %s129
      %p133 = pneg %p127
      %p134 = scmp.eq.s32.totalorder %s10, 3
      %p135 = por %p133, %p134
      %p136 = scmp.ne.s32.totalorder %s128, %s131
      %p137 = scmp.eq.s32.totalorder %s10, 0
      %p138 = por %p136, %p137
      %p139 = scmp.ne.s32.totalorder %s128, %s131
      %p140 = scmp.eq.s32.totalorder %s15, 3
      %p141 = por %p139, %p140
      %p142 = scmp.ne.s32.totalorder %s131, %s132
      %p143 = scmp.eq.s32.totalorder %s15, 0
      %p144 = por %p142, %p143
      %p145 = scmp.ne.s32.totalorder %s131, %s132
      %p146 = scmp.eq.s32.totalorder %s16, 3
      %p147 = por %p145, %p146
      %p149 = scmp.ne.s32.totalorder %s132, %s148
      %p150 = scmp.eq.s32.totalorder %s16, 0
      %p151 = por %p149, %p150
      %p152 = scmp.le.s32.totalorder 1, %s10
      %p153 = scmp.lt.s32.totalorder %s10, 5
      %p154 = pnand %p152, %p153
      %p155 = pneg %p154
      // Predicated region
      $region9: #{run.4} parent=5 // pred_check
        _
      $region10: #{run.4} parent=5 // pred_check_branch
        %157 = sbr.rel (%p154) target = $region12
      $region11: #{run.4} parent=5 // pred_region
        %s158 = ssub.s32 %s10, 1
        // Predicated region
        $region13: #{run.4} parent=11 // pred_check
          %p159 = pneg %p97
        $region14: #{run.4} parent=11 // pred_check_branch
          %161 = sbr.rel (%p159) target = $region16
        $region15: #{run.4} parent=11 // pred_region
          _
        $region16: #{run.4} parent=11 // pred_fallthru
          _
        // Predicated region
        $region17: #{run.4} parent=11 // pred_check
          %p162 = pneg %p118
        $region18: #{run.4} parent=11 // pred_check_branch
          %164 = sbr.rel (%p162) target = $region20
        $region19: #{run.4} parent=11 // pred_region
          _
        $region20: #{run.4} parent=11 // pred_fallthru
          _
      $region12: #{run.4} parent=5 // pred_fallthru
        _
      %p165 = scmp.lt.s32.totalorder %s10, 4
      // Predicated region
      $region21: #{run.4} parent=5 // pred_check
        %p166 = pneg %p165
      $region22: #{run.4} parent=5 // pred_check_branch
        %168 = sbr.rel (%p166) target = $region24
      $region23: #{run.4} parent=5 // pred_region
        // Predicated region
        $region25: #{run.4} parent=23 // pred_check
          %p169 = pneg %p44
        $region26: #{run.4} parent=23 // pred_check_branch
          %171 = sbr.rel (%p169) target = $region28
        $region27: #{run.4} parent=23 // pred_region
          %s172 = sand.u32 %s34, 1
          %s173 = sand.u32 %s34, 1
          %s174 = smul.addr %s173, 64
          %s175 = scalar_lea.vmem [#allocation3], %s174
          %s176 = smul.u32 16, %s17
          %s177 = smul.addr %s176, 2
          %s178 = sadd.s32 %s18, %s177
          %s179 = smul.addr %s178, 4
          %s180 = scalar_lea.vmem %s0, %s179
          // Predicated region
          $region29: #{run.4} parent=27 // pred_check
            _
          $region30: #{run.4} parent=27 // pred_check_branch
            %182 = sbr.rel (0) target = $region32
          $region31: #{run.4} parent=27 // pred_region
            // Predicated region
            $region33: #{run.4} parent=31 // pred_check
              _
            $region34: #{run.4} parent=31 // pred_check_branch
              %184 = sbr.rel target = $region36
            $region35: #{run.4} parent=31 // pred_region
              // Predicated region
              $region48: #{run.4} parent=35 // pred_check
                _
              $region49: #{run.4} parent=35 // pred_check_branch
                %230 = sbr.rel (0) target = $region51
              $region50: #{run.4} parent=35 // pred_region
                loop: start=0, step=1, limit=1
                $region52: #{run.4} parent=50 // loop_pre_header
                  _
                $region53: #{run.4} parent=50 // loop_header
                  %s232 = sphi 0, %s236
                  %p233 = scmp.ge.s32.totalorder %s232, 1
                  %s237 = sphi %s180, %s180
                  %s238 = sphi %s175, %s175
                $region54: #{run.4} parent=50 // loop_header_branch
                  %235 = sbr.rel (%p233) target = $region58
                $region55: #{run.4} parent=50 // loop_body
                  _
                $region56: #{run.4} parent=50 // loop_footer
                  %s236 = sadd.s32 1, %s232
                $region57: #{run.4} parent=50 // loop_footer_branch
                  %231 = sbr.rel target = $region53
                $region58: #{run.4} parent=50 // loop_exit
                  _
                %s240 = ssub.s32 16, 1
                loop: start=0, step=1, limit=1
                $region59: #{run.4} parent=50 // loop_pre_header
                  _
                $region60: #{run.4} parent=50 // loop_header
                  %s242 = sphi 0, %s246
                  %p243 = scmp.ge.s32.totalorder %s242, 1
                  %s247 = sphi %s180, %s180
                  %s248 = sphi %s175, %s175
                $region61: #{run.4} parent=50 // loop_header_branch
                  %245 = sbr.rel (%p243) target = $region65
                $region62: #{run.4} parent=50 // loop_body
                  %v249 = vld [vmem:[%s247] sm:%s240]
                  %250 = vst [vmem:[%s248] sm:%s240] %v249
                  %v251 = vld [vmem:[%s247 + $0x8] sm:%s240]
                  %252 = vst [vmem:[%s248 + $0x4] sm:%s240] %v251
                  %v253 = vld [vmem:[%s247 + $0x10] sm:%s240]
                  %254 = vst [vmem:[%s248 + $0x8] sm:%s240] %v253
                  %v255 = vld [vmem:[%s247 + $0x18] sm:%s240]
                  %256 = vst [vmem:[%s248 + $0xc] sm:%s240] %v255
                  %v257 = vld [vmem:[%s247 + $0x20] sm:%s240]
                  %258 = vst [vmem:[%s248 + $0x10] sm:%s240] %v257
                  %v259 = vld [vmem:[%s247 + $0x28] sm:%s240]
                  %260 = vst [vmem:[%s248 + $0x14] sm:%s240] %v259
                  %v261 = vld [vmem:[%s247 + $0x30] sm:%s240]
                  %262 = vst [vmem:[%s248 + $0x18] sm:%s240] %v261
                  %v263 = vld [vmem:[%s247 + $0x38] sm:%s240]
                  %264 = vst [vmem:[%s248 + $0x1c] sm:%s240] %v263
                  %v265 = vld [vmem:[%s247 + $0x40] sm:%s240]
                  %266 = vst [vmem:[%s248 + $0x20] sm:%s240] %v265
                  %v267 = vld [vmem:[%s247 + $0x48] sm:%s240]
                  %268 = vst [vmem:[%s248 + $0x24] sm:%s240] %v267
                  %v269 = vld [vmem:[%s247 + $0x50] sm:%s240]
                  %270 = vst [vmem:[%s248 + $0x28] sm:%s240] %v269
                  %v271 = vld [vmem:[%s247 + $0x58] sm:%s240]
                  %272 = vst [vmem:[%s248 + $0x2c] sm:%s240] %v271
                  %v273 = vld [vmem:[%s247 + $0x60] sm:%s240]
                  %274 = vst [vmem:[%s248 + $0x30] sm:%s240] %v273
                  %v275 = vld [vmem:[%s247 + $0x68] sm:%s240]
                  %276 = vst [vmem:[%s248 + $0x34] sm:%s240] %v275
                  %v277 = vld [vmem:[%s247 + $0x70] sm:%s240]
                  %278 = vst [vmem:[%s248 + $0x38] sm:%s240] %v277
                  %v279 = vld [vmem:[%s247 + $0x78] sm:%s240]
                  %280 = vst [vmem:[%s248 + $0x3c] sm:%s240] %v279
                $region63: #{run.4} parent=50 // loop_footer
                  %s246 = sadd.s32 1, %s242
                $region64: #{run.4} parent=50 // loop_footer_branch
                  %241 = sbr.rel target = $region60
                $region65: #{run.4} parent=50 // loop_exit
                  _
              $region51: #{run.4} parent=35 // pred_fallthru
                _
            $region36: #{run.4} parent=31 // pred_fallthru
              _
            // Predicated region
            $region37: #{run.4} parent=31 // pred_check
              _
            $region38: #{run.4} parent=31 // pred_check_branch
              %186 = sbr.rel (0) target = $region40
            $region39: #{run.4} parent=31 // pred_region
              %s188 = ssub.s32 16, 1
              loop: start=0, step=1, limit=1
              $region41: #{run.4} parent=39 // loop_pre_header
                _
              $region42: #{run.4} parent=39 // loop_header
                %s190 = sphi 0, %s194
                %p191 = scmp.ge.s32.totalorder %s190, 1
                %s195 = sphi %s180, %s180
                %s196 = sphi %s175, %s175
              $region43: #{run.4} parent=39 // loop_header_branch
                %193 = sbr.rel (%p191) target = $region47
              $region44: #{run.4} parent=39 // loop_body
                %v197 = vld [vmem:[%s195] sm:%s188]
                %198 = vst [vmem:[%s196] sm:%s188] %v197
                %v199 = vld [vmem:[%s195 + $0x8] sm:%s188]
                %200 = vst [vmem:[%s196 + $0x4] sm:%s188] %v199
                %v201 = vld [vmem:[%s195 + $0x10] sm:%s188]
                %202 = vst [vmem:[%s196 + $0x8] sm:%s188] %v201
                %v203 = vld [vmem:[%s195 + $0x18] sm:%s188]
                %204 = vst [vmem:[%s196 + $0xc] sm:%s188] %v203
                %v205 = vld [vmem:[%s195 + $0x20] sm:%s188]
                %206 = vst [vmem:[%s196 + $0x10] sm:%s188] %v205
                %v207 = vld [vmem:[%s195 + $0x28] sm:%s188]
                %208 = vst [vmem:[%s196 + $0x14] sm:%s188] %v207
                %v209 = vld [vmem:[%s195 + $0x30] sm:%s188]
                %210 = vst [vmem:[%s196 + $0x18] sm:%s188] %v209
                %v211 = vld [vmem:[%s195 + $0x38] sm:%s188]
                %212 = vst [vmem:[%s196 + $0x1c] sm:%s188] %v211
                %v213 = vld [vmem:[%s195 + $0x40] sm:%s188]
                %214 = vst [vmem:[%s196 + $0x20] sm:%s188] %v213
                %v215 = vld [vmem:[%s195 + $0x48] sm:%s188]
                %216 = vst [vmem:[%s196 + $0x24] sm:%s188] %v215
                %v217 = vld [vmem:[%s195 + $0x50] sm:%s188]
                %218 = vst [vmem:[%s196 + $0x28] sm:%s188] %v217
                %v219 = vld [vmem:[%s195 + $0x58] sm:%s188]
                %220 = vst [vmem:[%s196 + $0x2c] sm:%s188] %v219
                %v221 = vld [vmem:[%s195 + $0x60] sm:%s188]
                %222 = vst [vmem:[%s196 + $0x30] sm:%s188] %v221
                %v223 = vld [vmem:[%s195 + $0x68] sm:%s188]
                %224 = vst [vmem:[%s196 + $0x34] sm:%s188] %v223
                %v225 = vld [vmem:[%s195 + $0x70] sm:%s188]
                %226 = vst [vmem:[%s196 + $0x38] sm:%s188] %v225
                %v227 = vld [vmem:[%s195 + $0x78] sm:%s188]
                %228 = vst [vmem:[%s196 + $0x3c] sm:%s188] %v227
              $region45: #{run.4} parent=39 // loop_footer
                %s194 = sadd.s32 1, %s190
              $region46: #{run.4} parent=39 // loop_footer_branch
                %189 = sbr.rel target = $region42
              $region47: #{run.4} parent=39 // loop_exit
                _
            $region40: #{run.4} parent=31 // pred_fallthru
              _
          $region32: #{run.4} parent=27 // pred_fallthru
            _
          %281 = vnop
        $region28: #{run.4} parent=23 // pred_fallthru
          _
        // Predicated region
        $region66: #{run.4} parent=23 // pred_check
          %p282 = pneg %p70
        $region67: #{run.4} parent=23 // pred_check_branch
          %284 = sbr.rel (%p282) target = $region69
        $region68: #{run.4} parent=23 // pred_region
          %s285 = smul.u32 16, %s18
          %p286 = scmp.lt.s32.totalorder %s285, 31
          %s287 = scalar_select %p286, %s285, 31
          %s288 = smul.addr %s287, 4
          %s289 = scalar_lea.vmem %s1, %s288
          %s290 = smul.u32 16, %s18
        $region69: #{run.4} parent=23 // pred_fallthru
          _
      $region24: #{run.4} parent=5 // pred_fallthru
        _
      %p291 = scmp.le.s32.totalorder 1, %s10
      %p292 = scmp.lt.s32.totalorder %s10, 5
      %p293 = pnand %p291, %p292
      %p294 = pneg %p293
      // Predicated region
      $region70: #{run.4} parent=5 // pred_check
        _
      $region71: #{run.4} parent=5 // pred_check_branch
        %296 = sbr.rel (%p293) target = $region73
      $region72: #{run.4} parent=5 // pred_region
        %s297 = ssub.s32 %s10, 1
        %s298 = sand.u32 %s37, 1
        %s299 = sand.u32 %s37, 1
        %s300 = smul.addr %s299, 64
        %s301 = scalar_lea.vmem [#allocation3], %s300
        // Predicated region
        $region74: #{run.4} parent=72 // pred_check
          %p302 = pneg %p50
        $region75: #{run.4} parent=72 // pred_check_branch
          %304 = sbr.rel (%p302) target = $region77
        $region76: #{run.4} parent=72 // pred_region
          _
        $region77: #{run.4} parent=72 // pred_fallthru
          _
        %s305 = sand.u32 %s37, 1
        %s306 = sand.u32 %s37, 1
        %s307 = smul.addr %s306, 64
        %s308 = scalar_lea.vmem [#allocation3], %s307
        %p309 = pneg %p50
        %p310 = pneg %p47
        %s311 = smul.u32 16, %s20
        %p312 = scmp.lt.s32.totalorder %s311, 31
        %s313 = scalar_select %p312, %s311, 31
        %s314 = smul.addr %s313, 4
        %s315 = scalar_lea.vmem %s1, %s314
        %p316 = pneg %p76
        %p317 = pneg %p73
        %p318 = pneg %p97
        %p319 = pneg %p94
        %p320 = pneg %p118
        %p321 = pneg %p115
        %p322 = pneg %p144
        %p323 = pneg %p141
        %s324 = smul.u32 16, %s19
        %p325 = scmp.lt.s32.totalorder %s324, 31
        %s326 = scalar_select %p325, %s324, 31
        %s327 = smul.addr %s326, 8
        %s328 = scalar_lea.vmem %s4, %s327
        %s329 = smul.u32 16, %s19
        %s330 = smul.u32 16, %s20
        %p331 = scmp.lt.s32.totalorder %s330, 31
        %s332 = scalar_select %p331, %s330, 31
        %s333 = smul.addr %s332, 4
        %s334 = scalar_lea.vmem %s1, %s333
        %s335 = smul.u32 16, %s20
        %s336 = smul.u32 16, %s19
        %p337 = scmp.lt.s32.totalorder %s336, 31
        %s338 = scalar_select %p337, %s336, 31
        %s339 = smul.addr %s338, 8
        %s340 = scalar_lea.vmem %s4, %s339
        %s341 = smul.u32 16, %s19
        %p342 = scmp.eq.s32.totalorder %s20, 0
        // Predicated region
        $region78: #{run.4} parent=72 // pred_check
          %p343 = pneg %p342
        $region79: #{run.4} parent=72 // pred_check_branch
          %345 = sbr.rel (%p343) target = $region81
        $region80: #{run.4} parent=72 // pred_region
          %346 = vst [vmem:[#allocation2] sm:$0xff] 0.0
          %347 = vst [vmem:[#allocation2 + $0x8] sm:$0xff] 0.0
          %348 = vst [vmem:[#allocation2 + $0x10] sm:$0xff] 0.0
          %349 = vst [vmem:[#allocation2 + $0x18] sm:$0xff] 0.0
          %350 = vst [vmem:[#allocation2 + $0x20] sm:$0xff] 0.0
          %351 = vst [vmem:[#allocation2 + $0x28] sm:$0xff] 0.0
          %352 = vst [vmem:[#allocation2 + $0x30] sm:$0xff] 0.0
          %353 = vst [vmem:[#allocation2 + $0x38] sm:$0xff] 0.0
          %354 = vst [vmem:[#allocation2 + $0x40] sm:$0xff] 0.0
          %355 = vst [vmem:[#allocation2 + $0x48] sm:$0xff] 0.0
          %356 = vst [vmem:[#allocation2 + $0x50] sm:$0xff] 0.0
          %357 = vst [vmem:[#allocation2 + $0x58] sm:$0xff] 0.0
          %358 = vst [vmem:[#allocation2 + $0x60] sm:$0xff] 0.0
          %359 = vst [vmem:[#allocation2 + $0x68] sm:$0xff] 0.0
          %360 = vst [vmem:[#allocation2 + $0x70] sm:$0xff] 0.0
          %361 = vst [vmem:[#allocation2 + $0x78] sm:$0xff] 0.0
        $region81: #{run.4} parent=72 // pred_fallthru
          _
        %v362 = vld [vmem:[#allocation2] sm:$0xff]
        %v363 = vld [vmem:[#allocation2 + $0x8] sm:$0xff]
        %v364 = vld [vmem:[#allocation2 + $0x10] sm:$0xff]
        %v365 = vld [vmem:[#allocation2 + $0x18] sm:$0xff]
        %v366 = vld [vmem:[#allocation2 + $0x20] sm:$0xff]
        %v367 = vld [vmem:[#allocation2 + $0x28] sm:$0xff]
        %v368 = vld [vmem:[#allocation2 + $0x30] sm:$0xff]
        %v369 = vld [vmem:[#allocation2 + $0x38] sm:$0xff]
        %v370 = vld [vmem:[#allocation2 + $0x40] sm:$0xff]
        %v371 = vld [vmem:[#allocation2 + $0x48] sm:$0xff]
        %v372 = vld [vmem:[#allocation2 + $0x50] sm:$0xff]
        %v373 = vld [vmem:[#allocation2 + $0x58] sm:$0xff]
        %v374 = vld [vmem:[#allocation2 + $0x60] sm:$0xff]
        %v375 = vld [vmem:[#allocation2 + $0x68] sm:$0xff]
        %v376 = vld [vmem:[#allocation2 + $0x70] sm:$0xff]
        %v377 = vld [vmem:[#allocation2 + $0x78] sm:$0xff]
        %v378 = vld [vmem:[%s301] sm:$0xf]
        %v379 = vld [vmem:[%s301 + $0x4] sm:$0xf]
        %v380 = vld [vmem:[%s301 + $0x8] sm:$0xf]
        %v381 = vld [vmem:[%s301 + $0xc] sm:$0xf]
        %v382 = vld [vmem:[%s301 + $0x10] sm:$0xf]
        %v383 = vld [vmem:[%s301 + $0x14] sm:$0xf]
        %v384 = vld [vmem:[%s301 + $0x18] sm:$0xf]
        %v385 = vld [vmem:[%s301 + $0x1c] sm:$0xf]
        %v386 = vld [vmem:[%s301 + $0x20] sm:$0xf]
        %v387 = vld [vmem:[%s301 + $0x24] sm:$0xf]
        %v388 = vld [vmem:[%s301 + $0x28] sm:$0xf]
        %v389 = vld [vmem:[%s301 + $0x2c] sm:$0xf]
        %v390 = vld [vmem:[%s301 + $0x30] sm:$0xf]
        %v391 = vld [vmem:[%s301 + $0x34] sm:$0xf]
        %v392 = vld [vmem:[%s301 + $0x38] sm:$0xf]
        %v393 = vld [vmem:[%s301 + $0x3c] sm:$0xf]
        %v394 = vld [vmem:[%s334] sm:$0xf]
        %v395 = vld [vmem:[%s334 + $0x4] sm:$0xf]
        %v396 = vld [vmem:[%s334 + $0x8] sm:$0xf]
        %v397 = vld [vmem:[%s334 + $0xc] sm:$0xf]
        %v398 = vld [vmem:[%s334 + $0x10] sm:$0xf]
        %v399 = vld [vmem:[%s334 + $0x14] sm:$0xf]
        %v400 = vld [vmem:[%s334 + $0x18] sm:$0xf]
        %v401 = vld [vmem:[%s334 + $0x1c] sm:$0xf]
        %v402 = vld [vmem:[%s334 + $0x20] sm:$0xf]
        %v403 = vld [vmem:[%s334 + $0x24] sm:$0xf]
        %v404 = vld [vmem:[%s334 + $0x28] sm:$0xf]
        %v405 = vld [vmem:[%s334 + $0x2c] sm:$0xf]
        %v406 = vld [vmem:[%s334 + $0x30] sm:$0xf]
        %v407 = vld [vmem:[%s334 + $0x34] sm:$0xf]
        %v408 = vld [vmem:[%s334 + $0x38] sm:$0xf]
        %v409 = vld [vmem:[%s334 + $0x3c] sm:$0xf]
        %v426 = vunpack.c.l.b16 %v378
        %v427 = vunpack.c.l.b16 %v379
        %v428 = vunpack.c.l.b16 %v380
        %v429 = vunpack.c.l.b16 %v381
        %v430 = vunpack.c.l.b16 %v382
        %v431 = vunpack.c.l.b16 %v383
        %v432 = vunpack.c.l.b16 %v384
        %v433 = vunpack.c.l.b16 %v385
        %v434 = vunpack.c.l.b16 %v386
        %v435 = vunpack.c.l.b16 %v387
        %v436 = vunpack.c.l.b16 %v388
        %v437 = vunpack.c.l.b16 %v389
        %v438 = vunpack.c.l.b16 %v390
        %v439 = vunpack.c.l.b16 %v391
        %v440 = vunpack.c.l.b16 %v392
        %v441 = vunpack.c.l.b16 %v393
        %v442 = vpack.c.b16 %v427, %v426
        %v443 = vpack.c.b16 %v429, %v428
        %v444 = vpack.c.b16 %v431, %v430
        %v445 = vpack.c.b16 %v433, %v432
        %v446 = vpack.c.b16 %v435, %v434
        %v447 = vpack.c.b16 %v437, %v436
        %v448 = vpack.c.b16 %v439, %v438
        %v449 = vpack.c.b16 %v441, %v440
        %v474 = vunpack.c.l.b16 %v394
        %v475 = vunpack.c.l.b16 %v395
        %v476 = vunpack.c.l.b16 %v396
        %v477 = vunpack.c.l.b16 %v397
        %v478 = vunpack.c.l.b16 %v398
        %v479 = vunpack.c.l.b16 %v399
        %v480 = vunpack.c.l.b16 %v400
        %v481 = vunpack.c.l.b16 %v401
        %v482 = vunpack.c.l.b16 %v402
        %v483 = vunpack.c.l.b16 %v403
        %v484 = vunpack.c.l.b16 %v404
        %v485 = vunpack.c.l.b16 %v405
        %v486 = vunpack.c.l.b16 %v406
        %v487 = vunpack.c.l.b16 %v407
        %v488 = vunpack.c.l.b16 %v408
        %v489 = vunpack.c.l.b16 %v409
        %v490 = vpack.c.b16 %v475, %v474
        %v491 = vpack.c.b16 %v477, %v476
        %v492 = vpack.c.b16 %v479, %v478
        %v493 = vpack.c.b16 %v481, %v480
        %v494 = vpack.c.b16 %v483, %v482
        %v495 = vpack.c.b16 %v485, %v484
        %v496 = vpack.c.b16 %v487, %v486
        %v497 = vpack.c.b16 %v489, %v488
        %506 = vmatpush.bf16.msra.mxu0 %v497
        %507 = vmatpush.bf16.msra.mxu0 %v496
        %508 = vmatpush.bf16.msra.mxu0 %v495
        %509 = vmatpush.bf16.msra.mxu0 %v494
        %510 = vmatpush.bf16.msra.mxu0 %v493
        %511 = vmatpush.bf16.msra.mxu0 %v492
        %512 = vmatpush.bf16.msra.mxu0 %v491
        %513 = vmatpush.bf16.msra.mxu0 %v490
        %514 = vmatmul.bf16.gmra.mxu0 %v442
        %v515 = vpop.f32.mrf.mxu0
        %v516 = vadd.f32 0.0, %v515
        %v517 = vpop.f32.mrf.mxu0
        %v518 = vadd.f32 0.0, %v517
        %519 = vmatmul.bf16.gmra.mxu0 %v443
        %v520 = vpop.f32.mrf.mxu0
        %v521 = vadd.f32 0.0, %v520
        %v522 = vpop.f32.mrf.mxu0
        %v523 = vadd.f32 0.0, %v522
        %524 = vmatmul.bf16.gmra.mxu0 %v444
        %v525 = vpop.f32.mrf.mxu0
        %v526 = vadd.f32 0.0, %v525
        %v527 = vpop.f32.mrf.mxu0
        %v528 = vadd.f32 0.0, %v527
        %529 = vmatmul.bf16.gmra.mxu0 %v445
        %v530 = vpop.f32.mrf.mxu0
        %v531 = vadd.f32 0.0, %v530
        %v532 = vpop.f32.mrf.mxu0
        %v533 = vadd.f32 0.0, %v532
        %534 = vmatmul.bf16.gmra.mxu0 %v446
        %v535 = vpop.f32.mrf.mxu0
        %v536 = vadd.f32 0.0, %v535
        %v537 = vpop.f32.mrf.mxu0
        %v538 = vadd.f32 0.0, %v537
        %539 = vmatmul.bf16.gmra.mxu0 %v447
        %v540 = vpop.f32.mrf.mxu0
        %v541 = vadd.f32 0.0, %v540
        %v542 = vpop.f32.mrf.mxu0
        %v543 = vadd.f32 0.0, %v542
        %544 = vmatmul.bf16.gmra.mxu0 %v448
        %v545 = vpop.f32.mrf.mxu0
        %v546 = vadd.f32 0.0, %v545
        %v547 = vpop.f32.mrf.mxu0
        %v548 = vadd.f32 0.0, %v547
        %549 = vmatmul.bf16.gmra.mxu0 %v449
        %v550 = vpop.f32.mrf.mxu0
        %v551 = vadd.f32 0.0, %v550
        %v552 = vpop.f32.mrf.mxu0
        %v553 = vadd.f32 0.0, %v552
        %554 = vdwg.mxu0
        %v555 = vadd.f32 %v362, %v516
        %v556 = vadd.f32 %v363, %v518
        %v557 = vadd.f32 %v364, %v521
        %v558 = vadd.f32 %v365, %v523
        %v559 = vadd.f32 %v366, %v526
        %v560 = vadd.f32 %v367, %v528
        %v561 = vadd.f32 %v368, %v531
        %v562 = vadd.f32 %v369, %v533
        %v563 = vadd.f32 %v370, %v536
        %v564 = vadd.f32 %v371, %v538
        %v565 = vadd.f32 %v372, %v541
        %v566 = vadd.f32 %v373, %v543
        %v567 = vadd.f32 %v374, %v546
        %v568 = vadd.f32 %v375, %v548
        %v569 = vadd.f32 %v376, %v551
        %v570 = vadd.f32 %v377, %v553
        %571 = vst [vmem:[#allocation2] sm:$0xff] %v555
        %572 = vst [vmem:[#allocation2 + $0x8] sm:$0xff] %v556
        %573 = vst [vmem:[#allocation2 + $0x10] sm:$0xff] %v557
        %574 = vst [vmem:[#allocation2 + $0x18] sm:$0xff] %v558
        %575 = vst [vmem:[#allocation2 + $0x20] sm:$0xff] %v559
        %576 = vst [vmem:[#allocation2 + $0x28] sm:$0xff] %v560
        %577 = vst [vmem:[#allocation2 + $0x30] sm:$0xff] %v561
        %578 = vst [vmem:[#allocation2 + $0x38] sm:$0xff] %v562
        %579 = vst [vmem:[#allocation2 + $0x40] sm:$0xff] %v563
        %580 = vst [vmem:[#allocation2 + $0x48] sm:$0xff] %v564
        %581 = vst [vmem:[#allocation2 + $0x50] sm:$0xff] %v565
        %582 = vst [vmem:[#allocation2 + $0x58] sm:$0xff] %v566
        %583 = vst [vmem:[#allocation2 + $0x60] sm:$0xff] %v567
        %584 = vst [vmem:[#allocation2 + $0x68] sm:$0xff] %v568
        %585 = vst [vmem:[#allocation2 + $0x70] sm:$0xff] %v569
        %586 = vst [vmem:[#allocation2 + $0x78] sm:$0xff] %v570
        %p587 = scmp.eq.s32.totalorder %s20, 1
        // Predicated region
        $region82: #{run.4} parent=72 // pred_check
          %p588 = pneg %p587
        $region83: #{run.4} parent=72 // pred_check_branch
          %590 = sbr.rel (%p588) target = $region85
        $region84: #{run.4} parent=72 // pred_region
          %v591 = vld [vmem:[#allocation2] sm:$0xff]
          %v592 = vld [vmem:[#allocation2 + $0x8] sm:$0xff]
          %v593 = vld [vmem:[#allocation2 + $0x10] sm:$0xff]
          %v594 = vld [vmem:[#allocation2 + $0x18] sm:$0xff]
          %v595 = vld [vmem:[#allocation2 + $0x20] sm:$0xff]
          %v596 = vld [vmem:[#allocation2 + $0x28] sm:$0xff]
          %v597 = vld [vmem:[#allocation2 + $0x30] sm:$0xff]
          %v598 = vld [vmem:[#allocation2 + $0x38] sm:$0xff]
          %v599 = vld [vmem:[#allocation2 + $0x40] sm:$0xff]
          %v600 = vld [vmem:[#allocation2 + $0x48] sm:$0xff]
          %v601 = vld [vmem:[#allocation2 + $0x50] sm:$0xff]
          %v602 = vld [vmem:[#allocation2 + $0x58] sm:$0xff]
          %v603 = vld [vmem:[#allocation2 + $0x60] sm:$0xff]
          %v604 = vld [vmem:[#allocation2 + $0x68] sm:$0xff]
          %v605 = vld [vmem:[#allocation2 + $0x70] sm:$0xff]
          %v606 = vld [vmem:[#allocation2 + $0x78] sm:$0xff]
          %v607 = vld [vmem:[%s2] sm:$0xff]
          %v608 = vld [vmem:[%s2 + $0x8] sm:$0xff]
          %v609 = vld [vmem:[%s2 + $0x10] sm:$0xff]
          %v610 = vld [vmem:[%s2 + $0x18] sm:$0xff]
          %v611 = vld [vmem:[%s2 + $0x20] sm:$0xff]
          %v612 = vld [vmem:[%s2 + $0x28] sm:$0xff]
          %v613 = vld [vmem:[%s2 + $0x30] sm:$0xff]
          %v614 = vld [vmem:[%s2 + $0x38] sm:$0xff]
          %v615 = vld [vmem:[%s2 + $0x40] sm:$0xff]
          %v616 = vld [vmem:[%s2 + $0x48] sm:$0xff]
          %v617 = vld [vmem:[%s2 + $0x50] sm:$0xff]
          %v618 = vld [vmem:[%s2 + $0x58] sm:$0xff]
          %v619 = vld [vmem:[%s2 + $0x60] sm:$0xff]
          %v620 = vld [vmem:[%s2 + $0x68] sm:$0xff]
          %v621 = vld [vmem:[%s2 + $0x70] sm:$0xff]
          %v622 = vld [vmem:[%s2 + $0x78] sm:$0xff]
          %v623 = vld [vmem:[%s3] sm:$0x1]
          %v625 = vperm.slane %v623, 0
          %627 = vmatpush.msra.mxu0 %v622
          %628 = vmatpush.msra.mxu0 %v621
          %629 = vmatpush.msra.mxu0 %v620
          %630 = vmatpush.msra.mxu0 %v619
          %631 = vmatpush.msra.mxu0 %v618
          %632 = vmatpush.msra.mxu0 %v617
          %633 = vmatpush.msra.mxu0 %v616
          %634 = vmatpush.msra.mxu0 %v615
          %635 = vmatpush.msra.mxu0 %v614
          %636 = vmatpush.msra.mxu0 %v613
          %637 = vmatpush.msra.mxu0 %v612
          %638 = vmatpush.msra.mxu0 %v611
          %639 = vmatpush.msra.mxu0 %v610
          %640 = vmatpush.msra.mxu0 %v609
          %641 = vmatpush.msra.mxu0 %v608
          %642 = vmatpush.msra.mxu0 %v607
          %643 = vmatmul.f32.gmra.mxu0 %v591
          %v644 = vpop.f32.mrf.mxu0
          %v645 = vadd.f32 %v625, %v644
          %646 = vmatmul.f32.gmra.mxu0 %v592
          %v647 = vpop.f32.mrf.mxu0
          %v648 = vadd.f32 %v625, %v647
          %649 = vmatmul.f32.gmra.mxu0 %v593
          %v650 = vpop.f32.mrf.mxu0
          %v651 = vadd.f32 %v625, %v650
          %652 = vmatmul.f32.gmra.mxu0 %v594
          %v653 = vpop.f32.mrf.mxu0
          %v654 = vadd.f32 %v625, %v653
          %655 = vmatmul.f32.gmra.mxu0 %v595
          %v656 = vpop.f32.mrf.mxu0
          %v657 = vadd.f32 %v625, %v656
          %658 = vmatmul.f32.gmra.mxu0 %v596
          %v659 = vpop.f32.mrf.mxu0
          %v660 = vadd.f32 %v625, %v659
          %661 = vmatmul.f32.gmra.mxu0 %v597
          %v662 = vpop.f32.mrf.mxu0
          %v663 = vadd.f32 %v625, %v662
          %664 = vmatmul.f32.gmra.mxu0 %v598
          %v665 = vpop.f32.mrf.mxu0
          %v666 = vadd.f32 %v625, %v665
          %667 = vmatmul.f32.gmra.mxu0 %v599
          %v668 = vpop.f32.mrf.mxu0
          %v669 = vadd.f32 %v625, %v668
          %670 = vmatmul.f32.gmra.mxu0 %v600
          %v671 = vpop.f32.mrf.mxu0
          %v672 = vadd.f32 %v625, %v671
          %673 = vmatmul.f32.gmra.mxu0 %v601
          %v674 = vpop.f32.mrf.mxu0
          %v675 = vadd.f32 %v625, %v674
          %676 = vmatmul.f32.gmra.mxu0 %v602
          %v677 = vpop.f32.mrf.mxu0
          %v678 = vadd.f32 %v625, %v677
          %679 = vmatmul.f32.gmra.mxu0 %v603
          %v680 = vpop.f32.mrf.mxu0
          %v681 = vadd.f32 %v625, %v680
          %682 = vmatmul.f32.gmra.mxu0 %v604
          %v683 = vpop.f32.mrf.mxu0
          %v684 = vadd.f32 %v625, %v683
          %685 = vmatmul.f32.gmra.mxu0 %v605
          %v686 = vpop.f32.mrf.mxu0
          %v687 = vadd.f32 %v625, %v686
          %688 = vmatmul.f32.gmra.mxu0 %v606
          %v689 = vpop.f32.mrf.mxu0
          %v690 = vadd.f32 %v625, %v689
          %691 = vdwg.mxu0
          %692 = vst [vmem:[%s340] sm:$0xff] %v645
          %693 = vst [vmem:[%s340 + $0x8] sm:$0xff] %v648
          %694 = vst [vmem:[%s340 + $0x10] sm:$0xff] %v651
          %695 = vst [vmem:[%s340 + $0x18] sm:$0xff] %v654
          %696 = vst [vmem:[%s340 + $0x20] sm:$0xff] %v657
          %697 = vst [vmem:[%s340 + $0x28] sm:$0xff] %v660
          %698 = vst [vmem:[%s340 + $0x30] sm:$0xff] %v663
          %699 = vst [vmem:[%s340 + $0x38] sm:$0xff] %v666
          %700 = vst [vmem:[%s340 + $0x40] sm:$0xff] %v669
          %701 = vst [vmem:[%s340 + $0x48] sm:$0xff] %v672
          %702 = vst [vmem:[%s340 + $0x50] sm:$0xff] %v675
          %703 = vst [vmem:[%s340 + $0x58] sm:$0xff] %v678
          %704 = vst [vmem:[%s340 + $0x60] sm:$0xff] %v681
          %705 = vst [vmem:[%s340 + $0x68] sm:$0xff] %v684
          %706 = vst [vmem:[%s340 + $0x70] sm:$0xff] %v687
          %707 = vst [vmem:[%s340 + $0x78] sm:$0xff] %v690
        $region85: #{run.4} parent=72 // pred_fallthru
          _
        %s708 = smul.u32 16, %s19
        %p709 = scmp.lt.s32.totalorder %s708, 31
        %s710 = scalar_select %p709, %s708, 31
        %s711 = smul.addr %s710, 8
        %s712 = scalar_lea.vmem %s4, %s711
        // Predicated region
        $region86: #{run.4} parent=72 // pred_check
          %p713 = pneg %p141
        $region87: #{run.4} parent=72 // pred_check_branch
          %715 = sbr.rel (%p713) target = $region89
        $region88: #{run.4} parent=72 // pred_region
          %s716 = smul.u32 16, %s19
        $region89: #{run.4} parent=72 // pred_fallthru
          _
      $region73: #{run.4} parent=5 // pred_fallthru
        _
      %p717 = scmp.le.s32.totalorder 2, %s10
      // Predicated region
      $region90: #{run.4} parent=5 // pred_check
        %p718 = pneg %p717
      $region91: #{run.4} parent=5 // pred_check_branch
        %720 = sbr.rel (%p718) target = $region93
      $region92: #{run.4} parent=5 // pred_region
        %s721 = ssub.s32 %s10, 2
        // Predicated region
        $region94: #{run.4} parent=92 // pred_check
          %p722 = pneg %p147
        $region95: #{run.4} parent=92 // pred_check_branch
          %724 = sbr.rel (%p722) target = $region97
        $region96: #{run.4} parent=92 // pred_region
          %s725 = smul.u32 16, %s21
          %p726 = scmp.lt.s32.totalorder %s725, 31
          %s727 = scalar_select %p726, %s725, 31
          %s728 = smul.addr %s727, 8
          %s729 = scalar_lea.vmem %s4, %s728
        $region97: #{run.4} parent=92 // pred_fallthru
          _
      $region93: #{run.4} parent=5 // pred_fallthru
        _
    $region6: #{run.4} parent=1 // loop_footer
      %s14 = sadd.s32 1, %s10
    $region7: #{run.4} parent=1 // loop_footer_branch
      %9 = sbr.rel target = $region3
    $region8: #{run.4} parent=1 // loop_exit
      _

// kernel: run.3
$region0: #{run.3}
  #allocation0 [shape = 'u32[]', space=smem, size = 0x4, offset = 0x4, fixed_abs, tag = 'smem constant byte address 0x4 - core index']
  #allocation1 [shape = 'u32[72,128]{1,0:T(1,128)}', space=vmem, size = 0x9000, scoped, tag = 'internal scratch']
  #allocation2 [shape = 'f32[128,64]{1,0:T(8,128)}', space=vmem, size = 0x10000, scoped, tag = 'scratch operand']
  %s0 = inlined_call_operand.vmem [shape: bf16[256,256], index: 0, kind: input, shape index: {}]
  %s1 = inlined_call_operand.vmem [shape: bf16[256,64], index: 1, kind: input, shape index: {}]
  %s2 = inlined_call_operand.vmem [shape: f32[64,128], index: 2, kind: input, shape index: {}]
  %s3 = inlined_call_operand.vmem [shape: f32[1,128], index: 3, kind: input, shape index: {}]
  %s4 = inlined_call_operand.vmem [shape: bf16[256,128], index: 4, kind: output, shape index: {}]
  %s5 = sld [smem:[#allocation0]]
  $region98: #{run.3} parent=0
    _
  %s7 = ssub.s32 1, %s5
  %s8 = scalar_select 0, %s7, %s5
  $region1: #{run.3} parent=0
    #allocation3 [shape = 'u8[65536]{0}', space=vmem, size = 0x10000, scoped, tag = 'input window, operand 0']
    loop: start=0, step=1, limit=6
    $region2: #{run.3} parent=1 // loop_pre_header
      _
    $region3: #{run.3} parent=1 // loop_header
      %s10 = sphi 0, %s14
      %p11 = scmp.ge.s32.totalorder %s10, 6
      %s17 = sphi 0, %s29
      %s18 = sphi 0, %s25
      %s19 = sphi 0, %s17
      %s20 = sphi 0, %s18
      %s21 = sphi 0, %s19
      %s22 = sphi 0, %s20
      %s34 = sphi 0, %s36
      %s37 = sphi 0, %s34
      %s38 = sphi 0, %s37
      %s54 = sphi 0, %s38
      %s60 = sphi 0, %s62
      %s63 = sphi 0, %s60
      %s64 = sphi 0, %s63
      %s80 = sphi 0, %s64
      %s84 = sphi 0, %s84
      %s86 = sphi 0, %s84
      %s87 = sphi 0, %s86
      %s101 = sphi 0, %s87
      %s105 = sphi 0, %s105
      %s107 = sphi 0, %s105
      %s108 = sphi 0, %s107
      %s122 = sphi 0, %s108
      %s128 = sphi 0, %s130
      %s131 = sphi 0, %s128
      %s132 = sphi 0, %s131
      %s148 = sphi 0, %s132
    $region4: #{run.3} parent=1 // loop_header_branch
      %13 = sbr.rel (%p11) target = $region8
    $region5: #{run.3} parent=1 // loop_body
      %s15 = ssub.s32 %s10, 1
      %s16 = ssub.s32 %s10, 2
      %s23 = sadd.s32 1, %s18
      %p24 = scmp.ge.s32.totalorder %s23, 2
      %s25 = scalar_select %p24, 0, %s23
      %s26 = sadd.s32 1, %s17
      %s27 = scalar_select %p24, %s26, %s17
      %p28 = scmp.ge.s32.totalorder %s27, 2
      %s29 = scalar_select %p28, 0, %s27
      %s30 = ssub.s32 %s17, %s29
      %s31 = ssub.s32 %s18, %s25
      %s32 = sor.u32 %s30, %s31
      %p33 = scmp.eq.s32.totalorder %s32, 0
      %s35 = sadd.s32 %s34, 1
      %s36 = scalar_select %p33, %s34, %s35
      %p39 = pneg %p33
      %p40 = scmp.eq.s32.totalorder %s10, 3
      %p41 = por %p39, %p40
      %p42 = scmp.ne.s32.totalorder %s34, %s37
      %p43 = scmp.eq.s32.totalorder %s10, 0
      %p44 = por %p42, %p43
      %p45 = scmp.ne.s32.totalorder %s34, %s37
      %p46 = scmp.eq.s32.totalorder %s15, 3
      %p47 = por %p45, %p46
      %p48 = scmp.ne.s32.totalorder %s37, %s38
      %p49 = scmp.eq.s32.totalorder %s15, 0
      %p50 = por %p48, %p49
      %p51 = scmp.ne.s32.totalorder %s37, %s38
      %p52 = scmp.eq.s32.totalorder %s16, 3
      %p53 = por %p51, %p52
      %p55 = scmp.ne.s32.totalorder %s38, %s54
      %p56 = scmp.eq.s32.totalorder %s16, 0
      %p57 = por %p55, %p56
      %s58 = ssub.s32 %s18, %s25
      %p59 = scmp.eq.s32.totalorder %s58, 0
      %s61 = sadd.s32 %s60, 1
      %s62 = scalar_select %p59, %s60, %s61
      %p65 = pneg %p59
      %p66 = scmp.eq.s32.totalorder %s10, 3
      %p67 = por %p65, %p66
      %p68 = scmp.ne.s32.totalorder %s60, %s63
      %p69 = scmp.eq.s32.totalorder %s10, 0
      %p70 = por %p68, %p69
      %p71 = scmp.ne.s32.totalorder %s60, %s63
      %p72 = scmp.eq.s32.totalorder %s15, 3
      %p73 = por %p71, %p72
      %p74 = scmp.ne.s32.totalorder %s63, %s64
      %p75 = scmp.eq.s32.totalorder %s15, 0
      %p76 = por %p74, %p75
      %p77 = scmp.ne.s32.totalorder %s63, %s64
      %p78 = scmp.eq.s32.totalorder %s16, 3
      %p79 = por %p77, %p78
      %p81 = scmp.ne.s32.totalorder %s64, %s80
      %p82 = scmp.eq.s32.totalorder %s16, 0
      %p83 = por %p81, %p82
      %s85 = sadd.s32 %s84, 1
      %p88 = scmp.eq.s32.totalorder %s10, 3
      %p89 = scmp.ne.s32.totalorder %s84, %s86
      %p90 = scmp.eq.s32.totalorder %s10, 0
      %p91 = por %p89, %p90
      %p92 = scmp.ne.s32.totalorder %s84, %s86
      %p93 = scmp.eq.s32.totalorder %s15, 3
      %p94 = por %p92, %p93
      %p95 = scmp.ne.s32.totalorder %s86, %s87
      %p96 = scmp.eq.s32.totalorder %s15, 0
      %p97 = por %p95, %p96
      %p98 = scmp.ne.s32.totalorder %s86, %s87
      %p99 = scmp.eq.s32.totalorder %s16, 3
      %p100 = por %p98, %p99
      %p102 = scmp.ne.s32.totalorder %s87, %s101
      %p103 = scmp.eq.s32.totalorder %s16, 0
      %p104 = por %p102, %p103
      %s106 = sadd.s32 %s105, 1
      %p109 = scmp.eq.s32.totalorder %s10, 3
      %p110 = scmp.ne.s32.totalorder %s105, %s107
      %p111 = scmp.eq.s32.totalorder %s10, 0
      %p112 = por %p110, %p111
      %p113 = scmp.ne.s32.totalorder %s105, %s107
      %p114 = scmp.eq.s32.totalorder %s15, 3
      %p115 = por %p113, %p114
      %p116 = scmp.ne.s32.totalorder %s107, %s108
      %p117 = scmp.eq.s32.totalorder %s15, 0
      %p118 = por %p116, %p117
      %p119 = scmp.ne.s32.totalorder %s107, %s108
      %p120 = scmp.eq.s32.totalorder %s16, 3
      %p121 = por %p119, %p120
      %p123 = scmp.ne.s32.totalorder %s108, %s122
      %p124 = scmp.eq.s32.totalorder %s16, 0
      %p125 = por %p123, %p124
      %s126 = ssub.s32 %s17, %s29
      %p127 = scmp.eq.s32.totalorder %s126, 0
      %s129 = sadd.s32 %s128, 1
      %s130 = scalar_select %p127, %s128, %s129
      %p133 = pneg %p127
      %p134 = scmp.eq.s32.totalorder %s10, 3
      %p135 = por %p133, %p134
      %p136 = scmp.ne.s32.totalorder %s128, %s131
      %p137 = scmp.eq.s32.totalorder %s10, 0
      %p138 = por %p136, %p137
      %p139 = scmp.ne.s32.totalorder %s128, %s131
      %p140 = scmp.eq.s32.totalorder %s15, 3
      %p141 = por %p139, %p140
      %p142 = scmp.ne.s32.totalorder %s131, %s132
      %p143 = scmp.eq.s32.totalorder %s15, 0
      %p144 = por %p142, %p143
      %p145 = scmp.ne.s32.totalorder %s131, %s132
      %p146 = scmp.eq.s32.totalorder %s16, 3
      %p147 = por %p145, %p146
      %p149 = scmp.ne.s32.totalorder %s132, %s148
      %p150 = scmp.eq.s32.totalorder %s16, 0
      %p151 = por %p149, %p150
      %p152 = scmp.le.s32.totalorder 1, %s10
      %p153 = scmp.lt.s32.totalorder %s10, 5
      %p154 = pnand %p152, %p153
      %p155 = pneg %p154
      // Predicated region
      $region9: #{run.3} parent=5 // pred_check
        _
      $region10: #{run.3} parent=5 // pred_check_branch
        %157 = sbr.rel (%p154) target = $region12
      $region11: #{run.3} parent=5 // pred_region
        %s158 = ssub.s32 %s10, 1
        // Predicated region
        $region13: #{run.3} parent=11 // pred_check
          %p159 = pneg %p97
        $region14: #{run.3} parent=11 // pred_check_branch
          %161 = sbr.rel (%p159) target = $region16
        $region15: #{run.3} parent=11 // pred_region
          _
        $region16: #{run.3} parent=11 // pred_fallthru
          _
        // Predicated region
        $region17: #{run.3} parent=11 // pred_check
          %p162 = pneg %p118
        $region18: #{run.3} parent=11 // pred_check_branch
          %164 = sbr.rel (%p162) target = $region20
        $region19: #{run.3} parent=11 // pred_region
          _
        $region20: #{run.3} parent=11 // pred_fallthru
          _
      $region12: #{run.3} parent=5 // pred_fallthru
        _
      %p165 = scmp.lt.s32.totalorder %s10, 4
      // Predicated region
      $region21: #{run.3} parent=5 // pred_check
        %p166 = pneg %p165
      $region22: #{run.3} parent=5 // pred_check_branch
        %168 = sbr.rel (%p166) target = $region24
      $region23: #{run.3} parent=5 // pred_region
        // Predicated region
        $region25: #{run.3} parent=23 // pred_check
          %p169 = pneg %p44
        $region26: #{run.3} parent=23 // pred_check_branch
          %171 = sbr.rel (%p169) target = $region28
        $region27: #{run.3} parent=23 // pred_region
          %s172 = sand.u32 %s34, 1
          %s173 = sand.u32 %s34, 1
          %s174 = smul.addr %s173, 64
          %s175 = scalar_lea.vmem [#allocation3], %s174
          %s176 = smul.u32 16, %s17
          %s177 = smul.addr %s176, 2
          %s178 = sadd.s32 %s18, %s177
          %s179 = smul.addr %s178, 4
          %s180 = scalar_lea.vmem %s0, %s179
          // Predicated region
          $region29: #{run.3} parent=27 // pred_check
            _
          $region30: #{run.3} parent=27 // pred_check_branch
            %182 = sbr.rel (0) target = $region32
          $region31: #{run.3} parent=27 // pred_region
            // Predicated region
            $region33: #{run.3} parent=31 // pred_check
              _
            $region34: #{run.3} parent=31 // pred_check_branch
              %184 = sbr.rel target = $region36
            $region35: #{run.3} parent=31 // pred_region
              // Predicated region
              $region48: #{run.3} parent=35 // pred_check
                _
              $region49: #{run.3} parent=35 // pred_check_branch
                %230 = sbr.rel (0) target = $region51
              $region50: #{run.3} parent=35 // pred_region
                loop: start=0, step=1, limit=1
                $region52: #{run.3} parent=50 // loop_pre_header
                  _
                $region53: #{run.3} parent=50 // loop_header
                  %s232 = sphi 0, %s236
                  %p233 = scmp.ge.s32.totalorder %s232, 1
                  %s237 = sphi %s180, %s180
                  %s238 = sphi %s175, %s175
                $region54: #{run.3} parent=50 // loop_header_branch
                  %235 = sbr.rel (%p233) target = $region58
                $region55: #{run.3} parent=50 // loop_body
                  _
                $region56: #{run.3} parent=50 // loop_footer
                  %s236 = sadd.s32 1, %s232
                $region57: #{run.3} parent=50 // loop_footer_branch
                  %231 = sbr.rel target = $region53
                $region58: #{run.3} parent=50 // loop_exit
                  _
                %s240 = ssub.s32 16, 1
                loop: start=0, step=1, limit=1
                $region59: #{run.3} parent=50 // loop_pre_header
                  _
                $region60: #{run.3} parent=50 // loop_header
                  %s242 = sphi 0, %s246
                  %p243 = scmp.ge.s32.totalorder %s242, 1
                  %s247 = sphi %s180, %s180
                  %s248 = sphi %s175, %s175
                $region61: #{run.3} parent=50 // loop_header_branch
                  %245 = sbr.rel (%p243) target = $region65
                $region62: #{run.3} parent=50 // loop_body
                  %v249 = vld [vmem:[%s247] sm:%s240]
                  %250 = vst [vmem:[%s248] sm:%s240] %v249
                  %v251 = vld [vmem:[%s247 + $0x8] sm:%s240]
                  %252 = vst [vmem:[%s248 + $0x4] sm:%s240] %v251
                  %v253 = vld [vmem:[%s247 + $0x10] sm:%s240]
                  %254 = vst [vmem:[%s248 + $0x8] sm:%s240] %v253
                  %v255 = vld [vmem:[%s247 + $0x18] sm:%s240]
                  %256 = vst [vmem:[%s248 + $0xc] sm:%s240] %v255
                  %v257 = vld [vmem:[%s247 + $0x20] sm:%s240]
                  %258 = vst [vmem:[%s248 + $0x10] sm:%s240] %v257
                  %v259 = vld [vmem:[%s247 + $0x28] sm:%s240]
                  %260 = vst [vmem:[%s248 + $0x14] sm:%s240] %v259
                  %v261 = vld [vmem:[%s247 + $0x30] sm:%s240]
                  %262 = vst [vmem:[%s248 + $0x18] sm:%s240] %v261
                  %v263 = vld [vmem:[%s247 + $0x38] sm:%s240]
                  %264 = vst [vmem:[%s248 + $0x1c] sm:%s240] %v263
                  %v265 = vld [vmem:[%s247 + $0x40] sm:%s240]
                  %266 = vst [vmem:[%s248 + $0x20] sm:%s240] %v265
                  %v267 = vld [vmem:[%s247 + $0x48] sm:%s240]
                  %268 = vst [vmem:[%s248 + $0x24] sm:%s240] %v267
                  %v269 = vld [vmem:[%s247 + $0x50] sm:%s240]
                  %270 = vst [vmem:[%s248 + $0x28] sm:%s240] %v269
                  %v271 = vld [vmem:[%s247 + $0x58] sm:%s240]
                  %272 = vst [vmem:[%s248 + $0x2c] sm:%s240] %v271
                  %v273 = vld [vmem:[%s247 + $0x60] sm:%s240]
                  %274 = vst [vmem:[%s248 + $0x30] sm:%s240] %v273
                  %v275 = vld [vmem:[%s247 + $0x68] sm:%s240]
                  %276 = vst [vmem:[%s248 + $0x34] sm:%s240] %v275
                  %v277 = vld [vmem:[%s247 + $0x70] sm:%s240]
                  %278 = vst [vmem:[%s248 + $0x38] sm:%s240] %v277
                  %v279 = vld [vmem:[%s247 + $0x78] sm:%s240]
                  %280 = vst [vmem:[%s248 + $0x3c] sm:%s240] %v279
                $region63: #{run.3} parent=50 // loop_footer
                  %s246 = sadd.s32 1, %s242
                $region64: #{run.3} parent=50 // loop_footer_branch
                  %241 = sbr.rel target = $region60
                $region65: #{run.3} parent=50 // loop_exit
                  _
              $region51: #{run.3} parent=35 // pred_fallthru
                _
            $region36: #{run.3} parent=31 // pred_fallthru
              _
            // Predicated region
            $region37: #{run.3} parent=31 // pred_check
              _
            $region38: #{run.3} parent=31 // pred_check_branch
              %186 = sbr.rel (0) target = $region40
            $region39: #{run.3} parent=31 // pred_region
              %s188 = ssub.s32 16, 1
              loop: start=0, step=1, limit=1
              $region41: #{run.3} parent=39 // loop_pre_header
                _
              $region42: #{run.3} parent=39 // loop_header
                %s190 = sphi 0, %s194
                %p191 = scmp.ge.s32.totalorder %s190, 1
                %s195 = sphi %s180, %s180
                %s196 = sphi %s175, %s175
              $region43: #{run.3} parent=39 // loop_header_branch
                %193 = sbr.rel (%p191) target = $region47
              $region44: #{run.3} parent=39 // loop_body
                %v197 = vld [vmem:[%s195] sm:%s188]
                %198 = vst [vmem:[%s196] sm:%s188] %v197
                %v199 = vld [vmem:[%s195 + $0x8] sm:%s188]
                %200 = vst [vmem:[%s196 + $0x4] sm:%s188] %v199
                %v201 = vld [vmem:[%s195 + $0x10] sm:%s188]
                %202 = vst [vmem:[%s196 + $0x8] sm:%s188] %v201
                %v203 = vld [vmem:[%s195 + $0x18] sm:%s188]
                %204 = vst [vmem:[%s196 + $0xc] sm:%s188] %v203
                %v205 = vld [vmem:[%s195 + $0x20] sm:%s188]
                %206 = vst [vmem:[%s196 + $0x10] sm:%s188] %v205
                %v207 = vld [vmem:[%s195 + $0x28] sm:%s188]
                %208 = vst [vmem:[%s196 + $0x14] sm:%s188] %v207
                %v209 = vld [vmem:[%s195 + $0x30] sm:%s188]
                %210 = vst [vmem:[%s196 + $0x18] sm:%s188] %v209
                %v211 = vld [vmem:[%s195 + $0x38] sm:%s188]
                %212 = vst [vmem:[%s196 + $0x1c] sm:%s188] %v211
                %v213 = vld [vmem:[%s195 + $0x40] sm:%s188]
                %214 = vst [vmem:[%s196 + $0x20] sm:%s188] %v213
                %v215 = vld [vmem:[%s195 + $0x48] sm:%s188]
                %216 = vst [vmem:[%s196 + $0x24] sm:%s188] %v215
                %v217 = vld [vmem:[%s195 + $0x50] sm:%s188]
                %218 = vst [vmem:[%s196 + $0x28] sm:%s188] %v217
                %v219 = vld [vmem:[%s195 + $0x58] sm:%s188]
                %220 = vst [vmem:[%s196 + $0x2c] sm:%s188] %v219
                %v221 = vld [vmem:[%s195 + $0x60] sm:%s188]
                %222 = vst [vmem:[%s196 + $0x30] sm:%s188] %v221
                %v223 = vld [vmem:[%s195 + $0x68] sm:%s188]
                %224 = vst [vmem:[%s196 + $0x34] sm:%s188] %v223
                %v225 = vld [vmem:[%s195 + $0x70] sm:%s188]
                %226 = vst [vmem:[%s196 + $0x38] sm:%s188] %v225
                %v227 = vld [vmem:[%s195 + $0x78] sm:%s188]
                %228 = vst [vmem:[%s196 + $0x3c] sm:%s188] %v227
              $region45: #{run.3} parent=39 // loop_footer
                %s194 = sadd.s32 1, %s190
              $region46: #{run.3} parent=39 // loop_footer_branch
                %189 = sbr.rel target = $region42
              $region47: #{run.3} parent=39 // loop_exit
                _
            $region40: #{run.3} parent=31 // pred_fallthru
              _
          $region32: #{run.3} parent=27 // pred_fallthru
            _
          %281 = vnop
        $region28: #{run.3} parent=23 // pred_fallthru
          _
        // Predicated region
        $region66: #{run.3} parent=23 // pred_check
          %p282 = pneg %p70
        $region67: #{run.3} parent=23 // pred_check_branch
          %284 = sbr.rel (%p282) target = $region69
        $region68: #{run.3} parent=23 // pred_region
          %s285 = smul.u32 16, %s18
          %p286 = scmp.lt.s32.totalorder %s285, 31
          %s287 = scalar_select %p286, %s285, 31
          %s288 = smul.addr %s287, 4
          %s289 = scalar_lea.vmem %s1, %s288
          %s290 = smul.u32 16, %s18
        $region69: #{run.3} parent=23 // pred_fallthru
          _
      $region24: #{run.3} parent=5 // pred_fallthru
        _
      %p291 = scmp.le.s32.totalorder 1, %s10
      %p292 = scmp.lt.s32.totalorder %s10, 5
      %p293 = pnand %p291, %p292
      %p294 = pneg %p293
      // Predicated region
      $region70: #{run.3} parent=5 // pred_check
        _
      $region71: #{run.3} parent=5 // pred_check_branch
        %296 = sbr.rel (%p293) target = $region73
      $region72: #{run.3} parent=5 // pred_region
        %s297 = ssub.s32 %s10, 1
        %s298 = sand.u32 %s37, 1
        %s299 = sand.u32 %s37, 1
        %s300 = smul.addr %s299, 64
        %s301 = scalar_lea.vmem [#allocation3], %s300
        // Predicated region
        $region74: #{run.3} parent=72 // pred_check
          %p302 = pneg %p50
        $region75: #{run.3} parent=72 // pred_check_branch
          %304 = sbr.rel (%p302) target = $region77
        $region76: #{run.3} parent=72 // pred_region
          _
        $region77: #{run.3} parent=72 // pred_fallthru
          _
        %s305 = sand.u32 %s37, 1
        %s306 = sand.u32 %s37, 1
        %s307 = smul.addr %s306, 64
        %s308 = scalar_lea.vmem [#allocation3], %s307
        %p309 = pneg %p50
        %p310 = pneg %p47
        %s311 = smul.u32 16, %s20
        %p312 = scmp.lt.s32.totalorder %s311, 31
        %s313 = scalar_select %p312, %s311, 31
        %s314 = smul.addr %s313, 4
        %s315 = scalar_lea.vmem %s1, %s314
        %p316 = pneg %p76
        %p317 = pneg %p73
        %p318 = pneg %p97
        %p319 = pneg %p94
        %p320 = pneg %p118
        %p321 = pneg %p115
        %p322 = pneg %p144
        %p323 = pneg %p141
        %s324 = smul.u32 16, %s19
        %p325 = scmp.lt.s32.totalorder %s324, 31
        %s326 = scalar_select %p325, %s324, 31
        %s327 = smul.addr %s326, 4
        %s328 = scalar_lea.vmem %s4, %s327
        %s329 = smul.u32 16, %s19
        %s330 = smul.u32 16, %s20
        %p331 = scmp.lt.s32.totalorder %s330, 31
        %s332 = scalar_select %p331, %s330, 31
        %s333 = smul.addr %s332, 4
        %s334 = scalar_lea.vmem %s1, %s333
        %s335 = smul.u32 16, %s20
        %s336 = smul.u32 16, %s19
        %p337 = scmp.lt.s32.totalorder %s336, 31
        %s338 = scalar_select %p337, %s336, 31
        %s339 = smul.addr %s338, 4
        %s340 = scalar_lea.vmem %s4, %s339
        %s341 = smul.u32 16, %s19
        %p342 = scmp.eq.s32.totalorder %s20, 0
        // Predicated region
        $region78: #{run.3} parent=72 // pred_check
          %p343 = pneg %p342
        $region79: #{run.3} parent=72 // pred_check_branch
          %345 = sbr.rel (%p343) target = $region81
        $region80: #{run.3} parent=72 // pred_region
          %vm346 = vcmask 523264
          %347 = vst.msk [vmem:[#allocation2] sm:$0xff] %vm346, 0.0
          %348 = vst.msk [vmem:[#allocation2 + $0x8] sm:$0xff] %vm346, 0.0
          %349 = vst.msk [vmem:[#allocation2 + $0x10] sm:$0xff] %vm346, 0.0
          %350 = vst.msk [vmem:[#allocation2 + $0x18] sm:$0xff] %vm346, 0.0
          %351 = vst.msk [vmem:[#allocation2 + $0x20] sm:$0xff] %vm346, 0.0
          %352 = vst.msk [vmem:[#allocation2 + $0x28] sm:$0xff] %vm346, 0.0
          %353 = vst.msk [vmem:[#allocation2 + $0x30] sm:$0xff] %vm346, 0.0
          %354 = vst.msk [vmem:[#allocation2 + $0x38] sm:$0xff] %vm346, 0.0
          %355 = vst.msk [vmem:[#allocation2 + $0x40] sm:$0xff] %vm346, 0.0
          %356 = vst.msk [vmem:[#allocation2 + $0x48] sm:$0xff] %vm346, 0.0
          %357 = vst.msk [vmem:[#allocation2 + $0x50] sm:$0xff] %vm346, 0.0
          %358 = vst.msk [vmem:[#allocation2 + $0x58] sm:$0xff] %vm346, 0.0
          %359 = vst.msk [vmem:[#allocation2 + $0x60] sm:$0xff] %vm346, 0.0
          %360 = vst.msk [vmem:[#allocation2 + $0x68] sm:$0xff] %vm346, 0.0
          %361 = vst.msk [vmem:[#allocation2 + $0x70] sm:$0xff] %vm346, 0.0
          %362 = vst.msk [vmem:[#allocation2 + $0x78] sm:$0xff] %vm346, 0.0
        $region81: #{run.3} parent=72 // pred_fallthru
          _
        %v363 = vld [vmem:[#allocation2] sm:$0xff]
        %v364 = vld [vmem:[#allocation2 + $0x8] sm:$0xff]
        %v365 = vld [vmem:[#allocation2 + $0x10] sm:$0xff]
        %v366 = vld [vmem:[#allocation2 + $0x18] sm:$0xff]
        %v367 = vld [vmem:[#allocation2 + $0x20] sm:$0xff]
        %v368 = vld [vmem:[#allocation2 + $0x28] sm:$0xff]
        %v369 = vld [vmem:[#allocation2 + $0x30] sm:$0xff]
        %v370 = vld [vmem:[#allocation2 + $0x38] sm:$0xff]
        %v371 = vld [vmem:[#allocation2 + $0x40] sm:$0xff]
        %v372 = vld [vmem:[#allocation2 + $0x48] sm:$0xff]
        %v373 = vld [vmem:[#allocation2 + $0x50] sm:$0xff]
        %v374 = vld [vmem:[#allocation2 + $0x58] sm:$0xff]
        %v375 = vld [vmem:[#allocation2 + $0x60] sm:$0xff]
        %v376 = vld [vmem:[#allocation2 + $0x68] sm:$0xff]
        %v377 = vld [vmem:[#allocation2 + $0x70] sm:$0xff]
        %v378 = vld [vmem:[#allocation2 + $0x78] sm:$0xff]
        %v379 = vld [vmem:[%s301] sm:$0xf]
        %v380 = vld [vmem:[%s301 + $0x4] sm:$0xf]
        %v381 = vld [vmem:[%s301 + $0x8] sm:$0xf]
        %v382 = vld [vmem:[%s301 + $0xc] sm:$0xf]
        %v383 = vld [vmem:[%s301 + $0x10] sm:$0xf]
        %v384 = vld [vmem:[%s301 + $0x14] sm:$0xf]
        %v385 = vld [vmem:[%s301 + $0x18] sm:$0xf]
        %v386 = vld [vmem:[%s301 + $0x1c] sm:$0xf]
        %v387 = vld [vmem:[%s301 + $0x20] sm:$0xf]
        %v388 = vld [vmem:[%s301 + $0x24] sm:$0xf]
        %v389 = vld [vmem:[%s301 + $0x28] sm:$0xf]
        %v390 = vld [vmem:[%s301 + $0x2c] sm:$0xf]
        %v391 = vld [vmem:[%s301 + $0x30] sm:$0xf]
        %v392 = vld [vmem:[%s301 + $0x34] sm:$0xf]
        %v393 = vld [vmem:[%s301 + $0x38] sm:$0xf]
        %v394 = vld [vmem:[%s301 + $0x3c] sm:$0xf]
        %v395 = vld [vmem:[%s334] sm:$0xf]
        %v396 = vld [vmem:[%s334 + $0x4] sm:$0xf]
        %v397 = vld [vmem:[%s334 + $0x8] sm:$0xf]
        %v398 = vld [vmem:[%s334 + $0xc] sm:$0xf]
        %v399 = vld [vmem:[%s334 + $0x10] sm:$0xf]
        %v400 = vld [vmem:[%s334 + $0x14] sm:$0xf]
        %v401 = vld [vmem:[%s334 + $0x18] sm:$0xf]
        %v402 = vld [vmem:[%s334 + $0x1c] sm:$0xf]
        %v403 = vld [vmem:[%s334 + $0x20] sm:$0xf]
        %v404 = vld [vmem:[%s334 + $0x24] sm:$0xf]
        %v405 = vld [vmem:[%s334 + $0x28] sm:$0xf]
        %v406 = vld [vmem:[%s334 + $0x2c] sm:$0xf]
        %v407 = vld [vmem:[%s334 + $0x30] sm:$0xf]
        %v408 = vld [vmem:[%s334 + $0x34] sm:$0xf]
        %v409 = vld [vmem:[%s334 + $0x38] sm:$0xf]
        %v410 = vld [vmem:[%s334 + $0x3c] sm:$0xf]
        %v427 = vunpack.c.l.b16 %v379
        %v428 = vunpack.c.l.b16 %v380
        %v429 = vunpack.c.l.b16 %v381
        %v430 = vunpack.c.l.b16 %v382
        %v431 = vunpack.c.l.b16 %v383
        %v432 = vunpack.c.l.b16 %v384
        %v433 = vunpack.c.l.b16 %v385
        %v434 = vunpack.c.l.b16 %v386
        %v435 = vunpack.c.l.b16 %v387
        %v436 = vunpack.c.l.b16 %v388
        %v437 = vunpack.c.l.b16 %v389
        %v438 = vunpack.c.l.b16 %v390
        %v439 = vunpack.c.l.b16 %v391
        %v440 = vunpack.c.l.b16 %v392
        %v441 = vunpack.c.l.b16 %v393
        %v442 = vunpack.c.l.b16 %v394
        %v443 = vpack.c.b16 %v428, %v427
        %v444 = vpack.c.b16 %v430, %v429
        %v445 = vpack.c.b16 %v432, %v431
        %v446 = vpack.c.b16 %v434, %v433
        %v447 = vpack.c.b16 %v436, %v435
        %v448 = vpack.c.b16 %v438, %v437
        %v449 = vpack.c.b16 %v440, %v439
        %v450 = vpack.c.b16 %v442, %v441
        %v475 = vunpack.c.l.b16 %v395
        %v476 = vunpack.c.l.b16 %v396
        %v477 = vunpack.c.l.b16 %v397
        %v478 = vunpack.c.l.b16 %v398
        %v479 = vunpack.c.l.b16 %v399
        %v480 = vunpack.c.l.b16 %v400
        %v481 = vunpack.c.l.b16 %v401
        %v482 = vunpack.c.l.b16 %v402
        %v483 = vunpack.c.l.b16 %v403
        %v484 = vunpack.c.l.b16 %v404
        %v485 = vunpack.c.l.b16 %v405
        %v486 = vunpack.c.l.b16 %v406
        %v487 = vunpack.c.l.b16 %v407
        %v488 = vunpack.c.l.b16 %v408
        %v489 = vunpack.c.l.b16 %v409
        %v490 = vunpack.c.l.b16 %v410
        %v491 = vpack.c.b16 %v476, %v475
        %v492 = vpack.c.b16 %v478, %v477
        %v493 = vpack.c.b16 %v480, %v479
        %v494 = vpack.c.b16 %v482, %v481
        %v495 = vpack.c.b16 %v484, %v483
        %v496 = vpack.c.b16 %v486, %v485
        %v497 = vpack.c.b16 %v488, %v487
        %v498 = vpack.c.b16 %v490, %v489
        %507 = vmatpush.bf16.msra.mxu0 %v498
        %508 = vmatpush.bf16.msra.mxu0 %v497
        %509 = vmatpush.bf16.msra.mxu0 %v496
        %510 = vmatpush.bf16.msra.mxu0 %v495
        %511 = vmatpush.bf16.msra.mxu0 %v494
        %512 = vmatpush.bf16.msra.mxu0 %v493
        %513 = vmatpush.bf16.msra.mxu0 %v492
        %514 = vmatpush.bf16.msra.mxu0 %v491
        %515 = vmatmul.bf16.gmra.mxu0 %v443
        %v516 = vpop.f32.mrf.mxu0
        %v517 = vadd.f32 0.0, %v516
        %v518 = vpop.f32.mrf.mxu0
        %v519 = vadd.f32 0.0, %v518
        %520 = vmatmul.bf16.gmra.mxu0 %v444
        %v521 = vpop.f32.mrf.mxu0
        %v522 = vadd.f32 0.0, %v521
        %v523 = vpop.f32.mrf.mxu0
        %v524 = vadd.f32 0.0, %v523
        %525 = vmatmul.bf16.gmra.mxu0 %v445
        %v526 = vpop.f32.mrf.mxu0
        %v527 = vadd.f32 0.0, %v526
        %v528 = vpop.f32.mrf.mxu0
        %v529 = vadd.f32 0.0, %v528
        %530 = vmatmul.bf16.gmra.mxu0 %v446
        %v531 = vpop.f32.mrf.mxu0
        %v532 = vadd.f32 0.0, %v531
        %v533 = vpop.f32.mrf.mxu0
        %v534 = vadd.f32 0.0, %v533
        %535 = vmatmul.bf16.gmra.mxu0 %v447
        %v536 = vpop.f32.mrf.mxu0
        %v537 = vadd.f32 0.0, %v536
        %v538 = vpop.f32.mrf.mxu0
        %v539 = vadd.f32 0.0, %v538
        %540 = vmatmul.bf16.gmra.mxu0 %v448
        %v541 = vpop.f32.mrf.mxu0
        %v542 = vadd.f32 0.0, %v541
        %v543 = vpop.f32.mrf.mxu0
        %v544 = vadd.f32 0.0, %v543
        %545 = vmatmul.bf16.gmra.mxu0 %v449
        %v546 = vpop.f32.mrf.mxu0
        %v547 = vadd.f32 0.0, %v546
        %v548 = vpop.f32.mrf.mxu0
        %v549 = vadd.f32 0.0, %v548
        %550 = vmatmul.bf16.gmra.mxu0 %v450
        %v551 = vpop.f32.mrf.mxu0
        %v552 = vadd.f32 0.0, %v551
        %v553 = vpop.f32.mrf.mxu0
        %v554 = vadd.f32 0.0, %v553
        %555 = vdwg.mxu0
        %v556 = vadd.f32 %v363, %v517
        %v557 = vadd.f32 %v364, %v519
        %v558 = vadd.f32 %v365, %v522
        %v559 = vadd.f32 %v366, %v524
        %v560 = vadd.f32 %v367, %v527
        %v561 = vadd.f32 %v368, %v529
        %v562 = vadd.f32 %v369, %v532
        %v563 = vadd.f32 %v370, %v534
        %v564 = vadd.f32 %v371, %v537
        %v565 = vadd.f32 %v372, %v539
        %v566 = vadd.f32 %v373, %v542
        %v567 = vadd.f32 %v374, %v544
        %v568 = vadd.f32 %v375, %v547
        %v569 = vadd.f32 %v376, %v549
        %v570 = vadd.f32 %v377, %v552
        %v571 = vadd.f32 %v378, %v554
        %vm572 = vcmask 523264
        %573 = vst.msk [vmem:[#allocation2] sm:$0xff] %vm572, %v556
        %574 = vst.msk [vmem:[#allocation2 + $0x8] sm:$0xff] %vm572, %v557
        %575 = vst.msk [vmem:[#allocation2 + $0x10] sm:$0xff] %vm572, %v558
        %576 = vst.msk [vmem:[#allocation2 + $0x18] sm:$0xff] %vm572, %v559
        %577 = vst.msk [vmem:[#allocation2 + $0x20] sm:$0xff] %vm572, %v560
        %578 = vst.msk [vmem:[#allocation2 + $0x28] sm:$0xff] %vm572, %v561
        %579 = vst.msk [vmem:[#allocation2 + $0x30] sm:$0xff] %vm572, %v562
        %580 = vst.msk [vmem:[#allocation2 + $0x38] sm:$0xff] %vm572, %v563
        %581 = vst.msk [vmem:[#allocation2 + $0x40] sm:$0xff] %vm572, %v564
        %582 = vst.msk [vmem:[#allocation2 + $0x48] sm:$0xff] %vm572, %v565
        %583 = vst.msk [vmem:[#allocation2 + $0x50] sm:$0xff] %vm572, %v566
        %584 = vst.msk [vmem:[#allocation2 + $0x58] sm:$0xff] %vm572, %v567
        %585 = vst.msk [vmem:[#allocation2 + $0x60] sm:$0xff] %vm572, %v568
        %586 = vst.msk [vmem:[#allocation2 + $0x68] sm:$0xff] %vm572, %v569
        %587 = vst.msk [vmem:[#allocation2 + $0x70] sm:$0xff] %vm572, %v570
        %588 = vst.msk [vmem:[#allocation2 + $0x78] sm:$0xff] %vm572, %v571
        %p589 = scmp.eq.s32.totalorder %s20, 1
        // Predicated region
        $region82: #{run.3} parent=72 // pred_check
          %p590 = pneg %p589
        $region83: #{run.3} parent=72 // pred_check_branch
          %592 = sbr.rel (%p590) target = $region85
        $region84: #{run.3} parent=72 // pred_region
          %v593 = vld [vmem:[#allocation2] sm:$0xff]
          %v594 = vld [vmem:[#allocation2 + $0x8] sm:$0xff]
          %v595 = vld [vmem:[#allocation2 + $0x10] sm:$0xff]
          %v596 = vld [vmem:[#allocation2 + $0x18] sm:$0xff]
          %v597 = vld [vmem:[#allocation2 + $0x20] sm:$0xff]
          %v598 = vld [vmem:[#allocation2 + $0x28] sm:$0xff]
          %v599 = vld [vmem:[#allocation2 + $0x30] sm:$0xff]
          %v600 = vld [vmem:[#allocation2 + $0x38] sm:$0xff]
          %v601 = vld [vmem:[#allocation2 + $0x40] sm:$0xff]
          %v602 = vld [vmem:[#allocation2 + $0x48] sm:$0xff]
          %v603 = vld [vmem:[#allocation2 + $0x50] sm:$0xff]
          %v604 = vld [vmem:[#allocation2 + $0x58] sm:$0xff]
          %v605 = vld [vmem:[#allocation2 + $0x60] sm:$0xff]
          %v606 = vld [vmem:[#allocation2 + $0x68] sm:$0xff]
          %v607 = vld [vmem:[#allocation2 + $0x70] sm:$0xff]
          %v608 = vld [vmem:[#allocation2 + $0x78] sm:$0xff]
          %v609 = vld [vmem:[%s2] sm:$0xff]
          %v610 = vld [vmem:[%s2 + $0x8] sm:$0xff]
          %v611 = vld [vmem:[%s2 + $0x10] sm:$0xff]
          %v612 = vld [vmem:[%s2 + $0x18] sm:$0xff]
          %v613 = vld [vmem:[%s2 + $0x20] sm:$0xff]
          %v614 = vld [vmem:[%s2 + $0x28] sm:$0xff]
          %v615 = vld [vmem:[%s2 + $0x30] sm:$0xff]
          %v616 = vld [vmem:[%s2 + $0x38] sm:$0xff]
          %v617 = vld [vmem:[%s3] sm:$0x1]
          %v619 = vperm.slane %v617, 0
          %v622 = vsel %vm572, %v593, 0
          %v625 = vsel %vm572, %v594, 0
          %v628 = vsel %vm572, %v595, 0
          %v631 = vsel %vm572, %v596, 0
          %v634 = vsel %vm572, %v597, 0
          %v637 = vsel %vm572, %v598, 0
          %v640 = vsel %vm572, %v599, 0
          %v643 = vsel %vm572, %v600, 0
          %v646 = vsel %vm572, %v601, 0
          %v649 = vsel %vm572, %v602, 0
          %v652 = vsel %vm572, %v603, 0
          %v655 = vsel %vm572, %v604, 0
          %v658 = vsel %vm572, %v605, 0
          %v661 = vsel %vm572, %v606, 0
          %v664 = vsel %vm572, %v607, 0
          %v667 = vsel %vm572, %v608, 0
          %669 = vmatpush.msra.mxu0 0.0
          %670 = vmatpush.msra.mxu0 0.0
          %671 = vmatpush.msra.mxu0 0.0
          %672 = vmatpush.msra.mxu0 0.0
          %673 = vmatpush.msra.mxu0 0.0
          %674 = vmatpush.msra.mxu0 0.0
          %675 = vmatpush.msra.mxu0 0.0
          %676 = vmatpush.msra.mxu0 0.0
          %677 = vmatpush.msra.mxu0 %v616
          %678 = vmatpush.msra.mxu0 %v615
          %679 = vmatpush.msra.mxu0 %v614
          %680 = vmatpush.msra.mxu0 %v613
          %681 = vmatpush.msra.mxu0 %v612
          %682 = vmatpush.msra.mxu0 %v611
          %683 = vmatpush.msra.mxu0 %v610
          %684 = vmatpush.msra.mxu0 %v609
          %685 = vmatmul.f32.gmra.mxu0 %v622
          %v686 = vpop.f32.mrf.mxu0
          %v687 = vadd.f32 %v619, %v686
          %688 = vmatmul.f32.gmra.mxu0 %v625
          %v689 = vpop.f32.mrf.mxu0
          %v690 = vadd.f32 %v619, %v689
          %691 = vmatmul.f32.gmra.mxu0 %v628
          %v692 = vpop.f32.mrf.mxu0
          %v693 = vadd.f32 %v619, %v692
          %694 = vmatmul.f32.gmra.mxu0 %v631
          %v695 = vpop.f32.mrf.mxu0
          %v696 = vadd.f32 %v619, %v695
          %697 = vmatmul.f32.gmra.mxu0 %v634
          %v698 = vpop.f32.mrf.mxu0
          %v699 = vadd.f32 %v619, %v698
          %700 = vmatmul.f32.gmra.mxu0 %v637
          %v701 = vpop.f32.mrf.mxu0
          %v702 = vadd.f32 %v619, %v701
          %703 = vmatmul.f32.gmra.mxu0 %v640
          %v704 = vpop.f32.mrf.mxu0
          %v705 = vadd.f32 %v619, %v704
          %706 = vmatmul.f32.gmra.mxu0 %v643
          %v707 = vpop.f32.mrf.mxu0
          %v708 = vadd.f32 %v619, %v707
          %709 = vmatmul.f32.gmra.mxu0 %v646
          %v710 = vpop.f32.mrf.mxu0
          %v711 = vadd.f32 %v619, %v710
          %712 = vmatmul.f32.gmra.mxu0 %v649
          %v713 = vpop.f32.mrf.mxu0
          %v714 = vadd.f32 %v619, %v713
          %715 = vmatmul.f32.gmra.mxu0 %v652
          %v716 = vpop.f32.mrf.mxu0
          %v717 = vadd.f32 %v619, %v716
          %718 = vmatmul.f32.gmra.mxu0 %v655
          %v719 = vpop.f32.mrf.mxu0
          %v720 = vadd.f32 %v619, %v719
          %721 = vmatmul.f32.gmra.mxu0 %v658
          %v722 = vpop.f32.mrf.mxu0
          %v723 = vadd.f32 %v619, %v722
          %724 = vmatmul.f32.gmra.mxu0 %v661
          %v725 = vpop.f32.mrf.mxu0
          %v726 = vadd.f32 %v619, %v725
          %727 = vmatmul.f32.gmra.mxu0 %v664
          %v728 = vpop.f32.mrf.mxu0
          %v729 = vadd.f32 %v619, %v728
          %730 = vmatmul.f32.gmra.mxu0 %v667
          %v731 = vpop.f32.mrf.mxu0
          %v732 = vadd.f32 %v619, %v731
          %733 = vdwg.mxu0
          %v734 = vmax.f32 %v687, 0.0
          %v735 = vmax.f32 %v690, 0.0
          %v736 = vmax.f32 %v693, 0.0
          %v737 = vmax.f32 %v696, 0.0
          %v738 = vmax.f32 %v699, 0.0
          %v739 = vmax.f32 %v702, 0.0
          %v740 = vmax.f32 %v705, 0.0
          %v741 = vmax.f32 %v708, 0.0
          %v742 = vmax.f32 %v711, 0.0
          %v743 = vmax.f32 %v714, 0.0
          %v744 = vmax.f32 %v717, 0.0
          %v745 = vmax.f32 %v720, 0.0
          %v746 = vmax.f32 %v723, 0.0
          %v747 = vmax.f32 %v726, 0.0
          %v748 = vmax.f32 %v729, 0.0
          %v749 = vmax.f32 %v732, 0.0
          %v750 = vpack.c.bf16 %v734, %v734
          %v751 = vpack.c.bf16 %v735, %v735
          %v752 = vpack.c.bf16 %v736, %v736
          %v753 = vpack.c.bf16 %v737, %v737
          %v754 = vpack.c.bf16 %v738, %v738
          %v755 = vpack.c.bf16 %v739, %v739
          %v756 = vpack.c.bf16 %v740, %v740
          %v757 = vpack.c.bf16 %v741, %v741
          %v758 = vpack.c.bf16 %v742, %v742
          %v759 = vpack.c.bf16 %v743, %v743
          %v760 = vpack.c.bf16 %v744, %v744
          %v761 = vpack.c.bf16 %v745, %v745
          %v762 = vpack.c.bf16 %v746, %v746
          %v763 = vpack.c.bf16 %v747, %v747
          %v764 = vpack.c.bf16 %v748, %v748
          %v765 = vpack.c.bf16 %v749, %v749
          %766 = vst [vmem:[%s340] sm:$0xf] %v750
          %767 = vst [vmem:[%s340 + $0x4] sm:$0xf] %v751
          %768 = vst [vmem:[%s340 + $0x8] sm:$0xf] %v752
          %769 = vst [vmem:[%s340 + $0xc] sm:$0xf] %v753
          %770 = vst [vmem:[%s340 + $0x10] sm:$0xf] %v754
          %771 = vst [vmem:[%s340 + $0x14] sm:$0xf] %v755
          %772 = vst [vmem:[%s340 + $0x18] sm:$0xf] %v756
          %773 = vst [vmem:[%s340 + $0x1c] sm:$0xf] %v757
          %774 = vst [vmem:[%s340 + $0x20] sm:$0xf] %v758
          %775 = vst [vmem:[%s340 + $0x24] sm:$0xf] %v759
          %776 = vst [vmem:[%s340 + $0x28] sm:$0xf] %v760
          %777 = vst [vmem:[%s340 + $0x2c] sm:$0xf] %v761
          %778 = vst [vmem:[%s340 + $0x30] sm:$0xf] %v762
          %779 = vst [vmem:[%s340 + $0x34] sm:$0xf] %v763
          %780 = vst [vmem:[%s340 + $0x38] sm:$0xf] %v764
          %781 = vst [vmem:[%s340 + $0x3c] sm:$0xf] %v765
        $region85: #{run.3} parent=72 // pred_fallthru
          _
        %s782 = smul.u32 16, %s19
        %p783 = scmp.lt.s32.totalorder %s782, 31
        %s784 = scalar_select %p783, %s782, 31
        %s785 = smul.addr %s784, 4
        %s786 = scalar_lea.vmem %s4, %s785
        // Predicated region
        $region86: #{run.3} parent=72 // pred_check
          %p787 = pneg %p141
        $region87: #{run.3} parent=72 // pred_check_branch
          %789 = sbr.rel (%p787) target = $region89
        $region88: #{run.3} parent=72 // pred_region
          %s790 = smul.u32 16, %s19
        $region89: #{run.3} parent=72 // pred_fallthru
          _
      $region73: #{run.3} parent=5 // pred_fallthru
        _
      %p791 = scmp.le.s32.totalorder 2, %s10
      // Predicated region
      $region90: #{run.3} parent=5 // pred_check
        %p792 = pneg %p791
      $region91: #{run.3} parent=5 // pred_check_branch
        %794 = sbr.rel (%p792) target = $region93
      $region92: #{run.3} parent=5 // pred_region
        %s795 = ssub.s32 %s10, 2
        // Predicated region
        $region94: #{run.3} parent=92 // pred_check
          %p796 = pneg %p147
        $region95: #{run.3} parent=92 // pred_check_branch
          %798 = sbr.rel (%p796) target = $region97
        $region96: #{run.3} parent=92 // pred_region
          %s799 = smul.u32 16, %s21
          %p800 = scmp.lt.s32.totalorder %s799, 31
          %s801 = scalar_select %p800, %s799, 31
          %s802 = smul.addr %s801, 4
          %s803 = scalar_lea.vmem %s4, %s802
        $region97: #{run.3} parent=92 // pred_fallthru
          _
      $region93: #{run.3} parent=5 // pred_fallthru
        _
    $region6: #{run.3} parent=1 // loop_footer
      %s14 = sadd.s32 1, %s10
    $region7: #{run.3} parent=1 // loop_footer_branch
      %9 = sbr.rel target = $region3
    $region8: #{run.3} parent=1 // loop_exit
      _

</llo_original>
